<compile_context>
chip_gen: v6e
topology: v6e:2x2x1
jax: 0.10.0
libtpu: 0.0.40
codegen_flags: <defaults>
</compile_context>

<pallas_src>
import functools

import jax
import jax.numpy as jnp
from jax import lax
from jax.experimental import pallas as pl
from jax.experimental.pallas import tpu as pltpu

_I32_MIN = -(2 ** 31)      # knockout sentinel (no real key ever maps here)
_I32_MAX = 2 ** 31 - 1


def _topk_kernel(x_ref, vals_ref, idx_ref, *, k, kp, packed, blocks, tr):
    """Per grid step: top-k of every row of the (TB, N) block.

    Two-stage selection: stage 1 finds the top-k of each lane block (the
    per-block key slab stays resident in vregs across all k rounds), stage 2
    selects the global top-k from the nb*k candidates.  Keys are monotone
    sortable int32 (NaN mapped largest, -0.0 == +0.0) knocked out in place
    with INT32_MIN -- no separate `taken` mask / no extra store stream.
    """
    tb = x_ref.shape[0]
    nrs = tb // tr
    nb = len(blocks)

    # Hoisted per-lane-block global-column iotas (don't rebuild in the loop).
    gcols = [start + lax.broadcasted_iota(jnp.int32, (tr, width), 1)
             for start, width in blocks]

    def encode(xb, gcol):
        if packed:
            # bf16 fast path: reinterpret the bf16 bits as 16-bit ints (no f32
            # round trip), build a sortable 16-bit key and pack it with the
            # column:  key = (sortable - 0x8000) << 16 | (0xFFFF - col)
            # so ONE signed int32 max per round yields (max value, min col).
            b = pltpu.bitcast(xb, jnp.int16).astype(jnp.int32) & 0xFFFF
            is_nan = (b & 0x7FFF) > 0x7F80             # torch: NaN is largest
            b = jnp.where(b == 0x8000, 0, b)           # -0.0 == +0.0
            srt = jnp.where(b >= 0x8000, 0xFFFF - b, b + 0x8000)
            srt = jnp.where(is_nan, 0xFFFF, srt)
            return ((srt - 0x8000) << 16) | (0xFFFF - gcol)
        xf = xb.astype(jnp.float32)
        b = pltpu.bitcast(xf, jnp.int32)
        key = jnp.where(b < 0, b ^ 0x7FFFFFFF, b)      # monotone sortable i32
        key = jnp.where(key == -1, 0, key)             # -0.0 == +0.0
        key = jnp.where(jnp.isnan(xf), _I32_MAX, key)  # torch: NaN is largest
        return key

    def decode_vals(key):
        if packed:
            srt = (key >> 16) + 0x8000
            b = jnp.where(srt >= 0x8000, srt - 0x8000, 0xFFFF - srt)
            return pltpu.bitcast(b << 16, jnp.float32).astype(vals_ref.dtype)
        b = jnp.where(key < 0, key ^ 0x7FFFFFFF, key)
        return pltpu.bitcast(b, jnp.float32).astype(vals_ref.dtype)

    def process(row0):
        # ---- stage 1: per lane block, k rounds on a vreg-resident key slab.
        ckeys, cidx = [], []
        for bi, (start, width) in enumerate(blocks):
            xb = x_ref[pl.ds(row0, tr), pl.ds(start, width)]
            gcol = gcols[bi]
            keys = encode(xb, gcol)
            for _ in range(k):
                mk = jnp.max(keys, axis=1, keepdims=True)
                if packed:
                    ckeys.append(mk)
                    keys = jnp.where(keys == mk, _I32_MIN, keys)
                else:
                    idx = jnp.min(jnp.where(keys == mk, gcol, _I32_MAX),
                                  axis=1, keepdims=True)
                    ckeys.append(mk)
                    cidx.append(idx)
                    keys = jnp.where(gcol == idx, _I32_MIN, keys)

        # ---- stage 2: k rounds over the nb*k candidates (skipped if nb==1).
        if nb == 1:
            wkeys, widx = ckeys, cidx
        else:
            wkeys, widx = [], []
            ck = jnp.concatenate(ckeys, axis=1)
            ci = None if packed else jnp.concatenate(cidx, axis=1)
            for _ in range(k):
                mk = jnp.max(ck, axis=1, keepdims=True)
                wkeys.append(mk)
                if packed:
                    ck = jnp.where(ck == mk, _I32_MIN, ck)
                else:
                    idx = jnp.min(jnp.where(ck == mk, ci, _I32_MAX),
                                  axis=1, keepdims=True)
                    widx.append(idx)
                    ck = jnp.where(ci == idx, _I32_MIN, ck)

        # ---- outputs: k result columns concatenated once (no per-round
        # 128-lane-wide scatter), padded out to the lane-dense KP width.
        win = jnp.concatenate(wkeys, axis=1)                       # (tr, k)
        vals = decode_vals(win)
        idxs = (0xFFFF - (win & 0xFFFF)) if packed \
            else jnp.concatenate(widx, axis=1)
        if kp > k:
            vals = jnp.concatenate(
                [vals, jnp.zeros((tr, kp - k), vals_ref.dtype)], axis=1)
            idxs = jnp.concatenate(
                [idxs, jnp.zeros((tr, kp - k), jnp.int32)], axis=1)
        vals_ref[pl.ds(row0, tr), :] = vals
        idx_ref[pl.ds(row0, tr), :] = idxs

    @pl.loop(0, nrs)
    def _(r):
        process(pl.multiple_of(r * tr, tr))


def _lane_blocks(n, k):
    """Static (start, width) lane blocks for stage-1 selection."""
    if n < 256 or k > 128:
        return ((0, n),)
    bw = 128
    while pl.cdiv(n, bw) > 16:        # cap unrolled stage-1 code size
        bw *= 2
    return tuple((s, min(bw, n - s)) for s in range(0, n, bw))


def _choose_tiles(batch, n, kp, itemsize):
    tr = 16                            # inner row slab (bf16-pack friendly)
    # Per-row VMEM bytes per grid step: double-buffered input block plus
    # double-buffered lane-dense value + int32 index output blocks.
    per_row = 2 * n * itemsize + 2 * kp * (4 + itemsize)
    rows = (10 * 1024 * 1024) // max(per_row, 1)   # ~10 MiB/step fits the
    rows = max(tr, min(4096, (rows // tr) * tr))   # scoped VMEM on v5e/v6e/v7x
    rows = min(rows, pl.cdiv(batch, tr) * tr)
    if pl.cdiv(batch, rows) == 1 and batch > 2 * tr:
        # v7x megacore: ensure >= 2 grid steps so both TensorCores get work.
        rows = pl.cdiv(pl.cdiv(batch, 2), tr) * tr
    return rows, tr


def part_select(x, k=16):
    """torch.topk(x, dim=1, k=k) for a 2-D (B, N) input -> (values, indices)."""
    B, N = x.shape
    assert 0 < k <= N, (k, N)
    itemsize = jnp.dtype(x.dtype).itemsize

    kp = pl.cdiv(k, 128) * 128                    # lane-dense output width
    blocks = _lane_blocks(N, k)
    tb, tr = _choose_tiles(B, N, kp, itemsize)
    # bf16 gets the packed single-reduce path (column must fit in 16 bits).
    packed = (x.dtype == jnp.bfloat16) and (N <= 0xFFFF)

    kernel = functools.partial(_topk_kernel, k=k, kp=kp, packed=packed,
                               blocks=blocks, tr=tr)
    nb = len(blocks)
    cost = pl.CostEstimate(
        flops=6 * B * N * k + 6 * B * nb * k * k,
        transcendentals=0,
        bytes_accessed=B * N * itemsize + B * kp * (4 + itemsize))

    # No wrapper-side jnp.pad: the ragged last batch block is clipped by
    # Pallas boundary-block handling (garbage rows compute garbage, writes
    # outside (B, kp) are dropped).
    vals, idxs = pl.pallas_call(
        kernel,
        out_shape=(jax.ShapeDtypeStruct((B, kp), x.dtype),
                   jax.ShapeDtypeStruct((B, kp), jnp.int32)),
        grid_spec=pltpu.PrefetchScalarGridSpec(
            num_scalar_prefetch=0,
            grid=(pl.cdiv(B, tb),),
            in_specs=[pl.BlockSpec((tb, N), lambda i: (i, 0))],
            out_specs=(pl.BlockSpec((tb, kp), lambda i: (i, 0)),
                       pl.BlockSpec((tb, kp), lambda i: (i, 0)))),
        compiler_params=pltpu.CompilerParams(
            dimension_semantics=("parallel",),       # rows independent
            vmem_limit_bytes=32 * 1024 * 1024),
        cost_estimate=cost,
    )(x)

    # TODO(synk): torch.topk returns int64 indices; int32 here (fine for N < 2^31).
    # TODO(synk): for N >> 16*128 a grid axis over lane blocks with a VMEM
    # candidate scratch would stream the input instead of holding (TB, N).
    return vals[:, :k], idxs[:, :k]


if __name__ == "__main__":
    key = jax.random.PRNGKey(0)
    B, N, k = 2, 64, 16

    # float32, single lane block.
    x = jax.random.normal(key, (B, N), dtype=jnp.float32)
    vals, idxs = jax.block_until_ready(part_select(x, k=k))
    ref_vals, ref_idxs = jax.lax.top_k(x, k)
    assert jnp.allclose(vals, ref_vals), (vals, ref_vals)
    assert jnp.array_equal(idxs, ref_idxs.astype(jnp.int32)), (idxs, ref_idxs)

    # float32, two-stage path (N=384 -> 3 stage-1 lane blocks) with a ragged
    # batch (B=5 is not a multiple of the 16-row slab / tile).
    x2 = jax.random.normal(jax.random.PRNGKey(2), (5, 384), dtype=jnp.float32)
    v2, i2 = jax.block_until_ready(part_select(x2, k=k))
    r2v, r2i = jax.lax.top_k(x2, k)
    assert jnp.allclose(v2, r2v), (v2, r2v)
    assert jnp.array_equal(i2, r2i.astype(jnp.int32)), (i2, r2i)

    # NaN is ranked largest (torch.topk semantics).
    xn = x.at[0, 7].set(jnp.nan)
    vn, ixn = jax.block_until_ready(part_select(xn, k=k))
    assert bool(jnp.isnan(vn[0, 0])) and int(ixn[0, 0]) == 7, (vn[0], ixn[0])

    # bf16 packed single-reduce path.  (Assertions avoid relying on tie-break
    # order, which random bf16 rows can legitimately hit.)
    xb = jax.random.normal(jax.random.PRNGKey(1), (B, N)).astype(jnp.bfloat16)
    bvals, bidxs = jax.block_until_ready(part_select(xb, k=k))
    rvals, _ = jax.lax.top_k(xb.astype(jnp.float32), k)
    assert jnp.allclose(bvals.astype(jnp.float32), rvals), (bvals, rvals)
    gathered = jnp.take_along_axis(xb, bidxs, axis=1)
    assert jnp.array_equal(gathered, bvals), (gathered, bvals)
    srt_idx = jnp.sort(bidxs, axis=1)
    assert bool(jnp.all(srt_idx[:, 1:] != srt_idx[:, :-1])), bidxs

    print("KERNEL_OK")
</pallas_src>

<mosaic_0001>
module attributes {stable_mosaic.version = 11 : i64} {
  func.func @_topk_kernel(%arg0: i32, %arg1: memref<16x64xf32, #tpu.memory_space<vmem>>, %arg2: memref<16x128xf32, #tpu.memory_space<vmem>>, %arg3: memref<16x128xi32, #tpu.memory_space<vmem>>) attributes {dimension_semantics = [#tpu.dimension_semantics<parallel>], iteration_bounds = array<i64: 1>, scalar_prefetch = 0 : i64, scratch_operands = 0 : i64, tpu.core_type = #tpu.core_type<tc>, window_params = [{transform_indices = @transform_0, window_bounds = array<i64: 16, 64>}, {transform_indices = @transform_1, window_bounds = array<i64: 16, 128>}, {transform_indices = @transform_2, window_bounds = array<i64: 16, 128>}]} {
    %0 = tpu.iota {dimensions = array<i32: 1>} : vector<16x64xi32>
    %c0_i32 = arith.constant 0 : i32
    %1 = vector.broadcast %c0_i32 : i32 to vector<16x64xi32>
    %2 = arith.addi %1, %0 : vector<16x64xi32>
    %c0_i32_0 = arith.constant 0 : i32
    %c1_i32 = arith.constant 1 : i32
    %3 = arith.muli %c0_i32_0, %c1_i32 : i32
    %c0_i32_1 = arith.constant 0 : i32
    %4 = arith.addi %c0_i32_1, %3 : i32
    %c16_i32 = arith.constant 16 : i32
    %5 = arith.muli %4, %c16_i32 : i32
    %6 = tpu.assume_multiple %5, 16 : i32
    %7 = arith.index_cast %6 : i32 to index
    %c0 = arith.constant 0 : index
    %8 = vector.load %arg1[%7, %c0] : memref<16x64xf32, #tpu.memory_space<vmem>>, vector<16x64xf32>
    %9 = tpu.bitcast %8 : vector<16x64xf32> -> vector<16x64xi32>
    %c0_i32_2 = arith.constant 0 : i32
    %10 = vector.broadcast %c0_i32_2 : i32 to vector<16x64xi32>
    %11 = arith.cmpi slt, %9, %10 : vector<16x64xi32>
    %c2147483647_i32 = arith.constant 2147483647 : i32
    %12 = vector.broadcast %c2147483647_i32 : i32 to vector<16x64xi32>
    %13 = arith.xori %9, %12 : vector<16x64xi32>
    %14 = arith.select %11, %13, %9 : vector<16x64xi1>, vector<16x64xi32>
    %c-1_i32 = arith.constant -1 : i32
    %15 = vector.broadcast %c-1_i32 : i32 to vector<16x64xi32>
    %16 = arith.cmpi eq, %14, %15 : vector<16x64xi32>
    %c0_i32_3 = arith.constant 0 : i32
    %17 = vector.broadcast %c0_i32_3 : i32 to vector<16x64xi32>
    %18 = arith.select %16, %17, %14 : vector<16x64xi1>, vector<16x64xi32>
    %19 = arith.cmpf one, %8, %8 : vector<16x64xf32>
    %c2147483647_i32_4 = arith.constant 2147483647 : i32
    %20 = vector.broadcast %c2147483647_i32_4 : i32 to vector<16x64xi32>
    %21 = arith.select %19, %20, %18 : vector<16x64xi1>, vector<16x64xi32>
    %cst = arith.constant dense<-2147483648> : vector<16xi32>
    %22 = vector.multi_reduction <maxsi>, %21, %cst [1] : vector<16x64xi32> to vector<16xi32>
    %23 = vector.shape_cast %22 : vector<16xi32> to vector<16x1xi32>
    %24 = vector.broadcast %23 : vector<16x1xi32> to vector<16x64xi32>
    %25 = arith.cmpi eq, %21, %24 : vector<16x64xi32>
    %c2147483647_i32_5 = arith.constant 2147483647 : i32
    %26 = vector.broadcast %c2147483647_i32_5 : i32 to vector<16x64xi32>
    %27 = arith.select %25, %2, %26 : vector<16x64xi1>, vector<16x64xi32>
    %cst_6 = arith.constant dense<2147483647> : vector<16xi32>
    %28 = vector.multi_reduction <minsi>, %27, %cst_6 [1] : vector<16x64xi32> to vector<16xi32>
    %29 = vector.shape_cast %28 : vector<16xi32> to vector<16x1xi32>
    %30 = vector.broadcast %29 : vector<16x1xi32> to vector<16x64xi32>
    %31 = arith.cmpi eq, %2, %30 : vector<16x64xi32>
    %c-2147483648_i32 = arith.constant -2147483648 : i32
    %32 = vector.broadcast %c-2147483648_i32 : i32 to vector<16x64xi32>
    %33 = arith.select %31, %32, %21 : vector<16x64xi1>, vector<16x64xi32>
    %cst_7 = arith.constant dense<-2147483648> : vector<16xi32>
    %34 = vector.multi_reduction <maxsi>, %33, %cst_7 [1] : vector<16x64xi32> to vector<16xi32>
    %35 = vector.shape_cast %34 : vector<16xi32> to vector<16x1xi32>
    %36 = vector.broadcast %35 : vector<16x1xi32> to vector<16x64xi32>
    %37 = arith.cmpi eq, %33, %36 : vector<16x64xi32>
    %c2147483647_i32_8 = arith.constant 2147483647 : i32
    %38 = vector.broadcast %c2147483647_i32_8 : i32 to vector<16x64xi32>
    %39 = arith.select %37, %2, %38 : vector<16x64xi1>, vector<16x64xi32>
    %cst_9 = arith.constant dense<2147483647> : vector<16xi32>
    %40 = vector.multi_reduction <minsi>, %39, %cst_9 [1] : vector<16x64xi32> to vector<16xi32>
    %41 = vector.shape_cast %40 : vector<16xi32> to vector<16x1xi32>
    %42 = vector.broadcast %41 : vector<16x1xi32> to vector<16x64xi32>
    %43 = arith.cmpi eq, %2, %42 : vector<16x64xi32>
    %c-2147483648_i32_10 = arith.constant -2147483648 : i32
    %44 = vector.broadcast %c-2147483648_i32_10 : i32 to vector<16x64xi32>
    %45 = arith.select %43, %44, %33 : vector<16x64xi1>, vector<16x64xi32>
    %cst_11 = arith.constant dense<-2147483648> : vector<16xi32>
    %46 = vector.multi_reduction <maxsi>, %45, %cst_11 [1] : vector<16x64xi32> to vector<16xi32>
    %47 = vector.shape_cast %46 : vector<16xi32> to vector<16x1xi32>
    %48 = vector.broadcast %47 : vector<16x1xi32> to vector<16x64xi32>
    %49 = arith.cmpi eq, %45, %48 : vector<16x64xi32>
    %c2147483647_i32_12 = arith.constant 2147483647 : i32
    %50 = vector.broadcast %c2147483647_i32_12 : i32 to vector<16x64xi32>
    %51 = arith.select %49, %2, %50 : vector<16x64xi1>, vector<16x64xi32>
    %cst_13 = arith.constant dense<2147483647> : vector<16xi32>
    %52 = vector.multi_reduction <minsi>, %51, %cst_13 [1] : vector<16x64xi32> to vector<16xi32>
    %53 = vector.shape_cast %52 : vector<16xi32> to vector<16x1xi32>
    %54 = vector.broadcast %53 : vector<16x1xi32> to vector<16x64xi32>
    %55 = arith.cmpi eq, %2, %54 : vector<16x64xi32>
    %c-2147483648_i32_14 = arith.constant -2147483648 : i32
    %56 = vector.broadcast %c-2147483648_i32_14 : i32 to vector<16x64xi32>
    %57 = arith.select %55, %56, %45 : vector<16x64xi1>, vector<16x64xi32>
    %cst_15 = arith.constant dense<-2147483648> : vector<16xi32>
    %58 = vector.multi_reduction <maxsi>, %57, %cst_15 [1] : vector<16x64xi32> to vector<16xi32>
    %59 = vector.shape_cast %58 : vector<16xi32> to vector<16x1xi32>
    %60 = vector.broadcast %59 : vector<16x1xi32> to vector<16x64xi32>
    %61 = arith.cmpi eq, %57, %60 : vector<16x64xi32>
    %c2147483647_i32_16 = arith.constant 2147483647 : i32
    %62 = vector.broadcast %c2147483647_i32_16 : i32 to vector<16x64xi32>
    %63 = arith.select %61, %2, %62 : vector<16x64xi1>, vector<16x64xi32>
    %cst_17 = arith.constant dense<2147483647> : vector<16xi32>
    %64 = vector.multi_reduction <minsi>, %63, %cst_17 [1] : vector<16x64xi32> to vector<16xi32>
    %65 = vector.shape_cast %64 : vector<16xi32> to vector<16x1xi32>
    %66 = vector.broadcast %65 : vector<16x1xi32> to vector<16x64xi32>
    %67 = arith.cmpi eq, %2, %66 : vector<16x64xi32>
    %c-2147483648_i32_18 = arith.constant -2147483648 : i32
    %68 = vector.broadcast %c-2147483648_i32_18 : i32 to vector<16x64xi32>
    %69 = arith.select %67, %68, %57 : vector<16x64xi1>, vector<16x64xi32>
    %cst_19 = arith.constant dense<-2147483648> : vector<16xi32>
    %70 = vector.multi_reduction <maxsi>, %69, %cst_19 [1] : vector<16x64xi32> to vector<16xi32>
    %71 = vector.shape_cast %70 : vector<16xi32> to vector<16x1xi32>
    %72 = vector.broadcast %71 : vector<16x1xi32> to vector<16x64xi32>
    %73 = arith.cmpi eq, %69, %72 : vector<16x64xi32>
    %c2147483647_i32_20 = arith.constant 2147483647 : i32
    %74 = vector.broadcast %c2147483647_i32_20 : i32 to vector<16x64xi32>
    %75 = arith.select %73, %2, %74 : vector<16x64xi1>, vector<16x64xi32>
    %cst_21 = arith.constant dense<2147483647> : vector<16xi32>
    %76 = vector.multi_reduction <minsi>, %75, %cst_21 [1] : vector<16x64xi32> to vector<16xi32>
    %77 = vector.shape_cast %76 : vector<16xi32> to vector<16x1xi32>
    %78 = vector.broadcast %77 : vector<16x1xi32> to vector<16x64xi32>
    %79 = arith.cmpi eq, %2, %78 : vector<16x64xi32>
    %c-2147483648_i32_22 = arith.constant -2147483648 : i32
    %80 = vector.broadcast %c-2147483648_i32_22 : i32 to vector<16x64xi32>
    %81 = arith.select %79, %80, %69 : vector<16x64xi1>, vector<16x64xi32>
    %cst_23 = arith.constant dense<-2147483648> : vector<16xi32>
    %82 = vector.multi_reduction <maxsi>, %81, %cst_23 [1] : vector<16x64xi32> to vector<16xi32>
    %83 = vector.shape_cast %82 : vector<16xi32> to vector<16x1xi32>
    %84 = vector.broadcast %83 : vector<16x1xi32> to vector<16x64xi32>
    %85 = arith.cmpi eq, %81, %84 : vector<16x64xi32>
    %c2147483647_i32_24 = arith.constant 2147483647 : i32
    %86 = vector.broadcast %c2147483647_i32_24 : i32 to vector<16x64xi32>
    %87 = arith.select %85, %2, %86 : vector<16x64xi1>, vector<16x64xi32>
    %cst_25 = arith.constant dense<2147483647> : vector<16xi32>
    %88 = vector.multi_reduction <minsi>, %87, %cst_25 [1] : vector<16x64xi32> to vector<16xi32>
    %89 = vector.shape_cast %88 : vector<16xi32> to vector<16x1xi32>
    %90 = vector.broadcast %89 : vector<16x1xi32> to vector<16x64xi32>
    %91 = arith.cmpi eq, %2, %90 : vector<16x64xi32>
    %c-2147483648_i32_26 = arith.constant -2147483648 : i32
    %92 = vector.broadcast %c-2147483648_i32_26 : i32 to vector<16x64xi32>
    %93 = arith.select %91, %92, %81 : vector<16x64xi1>, vector<16x64xi32>
    %cst_27 = arith.constant dense<-2147483648> : vector<16xi32>
    %94 = vector.multi_reduction <maxsi>, %93, %cst_27 [1] : vector<16x64xi32> to vector<16xi32>
    %95 = vector.shape_cast %94 : vector<16xi32> to vector<16x1xi32>
    %96 = vector.broadcast %95 : vector<16x1xi32> to vector<16x64xi32>
    %97 = arith.cmpi eq, %93, %96 : vector<16x64xi32>
    %c2147483647_i32_28 = arith.constant 2147483647 : i32
    %98 = vector.broadcast %c2147483647_i32_28 : i32 to vector<16x64xi32>
    %99 = arith.select %97, %2, %98 : vector<16x64xi1>, vector<16x64xi32>
    %cst_29 = arith.constant dense<2147483647> : vector<16xi32>
    %100 = vector.multi_reduction <minsi>, %99, %cst_29 [1] : vector<16x64xi32> to vector<16xi32>
    %101 = vector.shape_cast %100 : vector<16xi32> to vector<16x1xi32>
    %102 = vector.broadcast %101 : vector<16x1xi32> to vector<16x64xi32>
    %103 = arith.cmpi eq, %2, %102 : vector<16x64xi32>
    %c-2147483648_i32_30 = arith.constant -2147483648 : i32
    %104 = vector.broadcast %c-2147483648_i32_30 : i32 to vector<16x64xi32>
    %105 = arith.select %103, %104, %93 : vector<16x64xi1>, vector<16x64xi32>
    %cst_31 = arith.constant dense<-2147483648> : vector<16xi32>
    %106 = vector.multi_reduction <maxsi>, %105, %cst_31 [1] : vector<16x64xi32> to vector<16xi32>
    %107 = vector.shape_cast %106 : vector<16xi32> to vector<16x1xi32>
    %108 = vector.broadcast %107 : vector<16x1xi32> to vector<16x64xi32>
    %109 = arith.cmpi eq, %105, %108 : vector<16x64xi32>
    %c2147483647_i32_32 = arith.constant 2147483647 : i32
    %110 = vector.broadcast %c2147483647_i32_32 : i32 to vector<16x64xi32>
    %111 = arith.select %109, %2, %110 : vector<16x64xi1>, vector<16x64xi32>
    %cst_33 = arith.constant dense<2147483647> : vector<16xi32>
    %112 = vector.multi_reduction <minsi>, %111, %cst_33 [1] : vector<16x64xi32> to vector<16xi32>
    %113 = vector.shape_cast %112 : vector<16xi32> to vector<16x1xi32>
    %114 = vector.broadcast %113 : vector<16x1xi32> to vector<16x64xi32>
    %115 = arith.cmpi eq, %2, %114 : vector<16x64xi32>
    %c-2147483648_i32_34 = arith.constant -2147483648 : i32
    %116 = vector.broadcast %c-2147483648_i32_34 : i32 to vector<16x64xi32>
    %117 = arith.select %115, %116, %105 : vector<16x64xi1>, vector<16x64xi32>
    %cst_35 = arith.constant dense<-2147483648> : vector<16xi32>
    %118 = vector.multi_reduction <maxsi>, %117, %cst_35 [1] : vector<16x64xi32> to vector<16xi32>
    %119 = vector.shape_cast %118 : vector<16xi32> to vector<16x1xi32>
    %120 = vector.broadcast %119 : vector<16x1xi32> to vector<16x64xi32>
    %121 = arith.cmpi eq, %117, %120 : vector<16x64xi32>
    %c2147483647_i32_36 = arith.constant 2147483647 : i32
    %122 = vector.broadcast %c2147483647_i32_36 : i32 to vector<16x64xi32>
    %123 = arith.select %121, %2, %122 : vector<16x64xi1>, vector<16x64xi32>
    %cst_37 = arith.constant dense<2147483647> : vector<16xi32>
    %124 = vector.multi_reduction <minsi>, %123, %cst_37 [1] : vector<16x64xi32> to vector<16xi32>
    %125 = vector.shape_cast %124 : vector<16xi32> to vector<16x1xi32>
    %126 = vector.broadcast %125 : vector<16x1xi32> to vector<16x64xi32>
    %127 = arith.cmpi eq, %2, %126 : vector<16x64xi32>
    %c-2147483648_i32_38 = arith.constant -2147483648 : i32
    %128 = vector.broadcast %c-2147483648_i32_38 : i32 to vector<16x64xi32>
    %129 = arith.select %127, %128, %117 : vector<16x64xi1>, vector<16x64xi32>
    %cst_39 = arith.constant dense<-2147483648> : vector<16xi32>
    %130 = vector.multi_reduction <maxsi>, %129, %cst_39 [1] : vector<16x64xi32> to vector<16xi32>
    %131 = vector.shape_cast %130 : vector<16xi32> to vector<16x1xi32>
    %132 = vector.broadcast %131 : vector<16x1xi32> to vector<16x64xi32>
    %133 = arith.cmpi eq, %129, %132 : vector<16x64xi32>
    %c2147483647_i32_40 = arith.constant 2147483647 : i32
    %134 = vector.broadcast %c2147483647_i32_40 : i32 to vector<16x64xi32>
    %135 = arith.select %133, %2, %134 : vector<16x64xi1>, vector<16x64xi32>
    %cst_41 = arith.constant dense<2147483647> : vector<16xi32>
    %136 = vector.multi_reduction <minsi>, %135, %cst_41 [1] : vector<16x64xi32> to vector<16xi32>
    %137 = vector.shape_cast %136 : vector<16xi32> to vector<16x1xi32>
    %138 = vector.broadcast %137 : vector<16x1xi32> to vector<16x64xi32>
    %139 = arith.cmpi eq, %2, %138 : vector<16x64xi32>
    %c-2147483648_i32_42 = arith.constant -2147483648 : i32
    %140 = vector.broadcast %c-2147483648_i32_42 : i32 to vector<16x64xi32>
    %141 = arith.select %139, %140, %129 : vector<16x64xi1>, vector<16x64xi32>
    %cst_43 = arith.constant dense<-2147483648> : vector<16xi32>
    %142 = vector.multi_reduction <maxsi>, %141, %cst_43 [1] : vector<16x64xi32> to vector<16xi32>
    %143 = vector.shape_cast %142 : vector<16xi32> to vector<16x1xi32>
    %144 = vector.broadcast %143 : vector<16x1xi32> to vector<16x64xi32>
    %145 = arith.cmpi eq, %141, %144 : vector<16x64xi32>
    %c2147483647_i32_44 = arith.constant 2147483647 : i32
    %146 = vector.broadcast %c2147483647_i32_44 : i32 to vector<16x64xi32>
    %147 = arith.select %145, %2, %146 : vector<16x64xi1>, vector<16x64xi32>
    %cst_45 = arith.constant dense<2147483647> : vector<16xi32>
    %148 = vector.multi_reduction <minsi>, %147, %cst_45 [1] : vector<16x64xi32> to vector<16xi32>
    %149 = vector.shape_cast %148 : vector<16xi32> to vector<16x1xi32>
    %150 = vector.broadcast %149 : vector<16x1xi32> to vector<16x64xi32>
    %151 = arith.cmpi eq, %2, %150 : vector<16x64xi32>
    %c-2147483648_i32_46 = arith.constant -2147483648 : i32
    %152 = vector.broadcast %c-2147483648_i32_46 : i32 to vector<16x64xi32>
    %153 = arith.select %151, %152, %141 : vector<16x64xi1>, vector<16x64xi32>
    %cst_47 = arith.constant dense<-2147483648> : vector<16xi32>
    %154 = vector.multi_reduction <maxsi>, %153, %cst_47 [1] : vector<16x64xi32> to vector<16xi32>
    %155 = vector.shape_cast %154 : vector<16xi32> to vector<16x1xi32>
    %156 = vector.broadcast %155 : vector<16x1xi32> to vector<16x64xi32>
    %157 = arith.cmpi eq, %153, %156 : vector<16x64xi32>
    %c2147483647_i32_48 = arith.constant 2147483647 : i32
    %158 = vector.broadcast %c2147483647_i32_48 : i32 to vector<16x64xi32>
    %159 = arith.select %157, %2, %158 : vector<16x64xi1>, vector<16x64xi32>
    %cst_49 = arith.constant dense<2147483647> : vector<16xi32>
    %160 = vector.multi_reduction <minsi>, %159, %cst_49 [1] : vector<16x64xi32> to vector<16xi32>
    %161 = vector.shape_cast %160 : vector<16xi32> to vector<16x1xi32>
    %162 = vector.broadcast %161 : vector<16x1xi32> to vector<16x64xi32>
    %163 = arith.cmpi eq, %2, %162 : vector<16x64xi32>
    %c-2147483648_i32_50 = arith.constant -2147483648 : i32
    %164 = vector.broadcast %c-2147483648_i32_50 : i32 to vector<16x64xi32>
    %165 = arith.select %163, %164, %153 : vector<16x64xi1>, vector<16x64xi32>
    %cst_51 = arith.constant dense<-2147483648> : vector<16xi32>
    %166 = vector.multi_reduction <maxsi>, %165, %cst_51 [1] : vector<16x64xi32> to vector<16xi32>
    %167 = vector.shape_cast %166 : vector<16xi32> to vector<16x1xi32>
    %168 = vector.broadcast %167 : vector<16x1xi32> to vector<16x64xi32>
    %169 = arith.cmpi eq, %165, %168 : vector<16x64xi32>
    %c2147483647_i32_52 = arith.constant 2147483647 : i32
    %170 = vector.broadcast %c2147483647_i32_52 : i32 to vector<16x64xi32>
    %171 = arith.select %169, %2, %170 : vector<16x64xi1>, vector<16x64xi32>
    %cst_53 = arith.constant dense<2147483647> : vector<16xi32>
    %172 = vector.multi_reduction <minsi>, %171, %cst_53 [1] : vector<16x64xi32> to vector<16xi32>
    %173 = vector.shape_cast %172 : vector<16xi32> to vector<16x1xi32>
    %174 = vector.broadcast %173 : vector<16x1xi32> to vector<16x64xi32>
    %175 = arith.cmpi eq, %2, %174 : vector<16x64xi32>
    %c-2147483648_i32_54 = arith.constant -2147483648 : i32
    %176 = vector.broadcast %c-2147483648_i32_54 : i32 to vector<16x64xi32>
    %177 = arith.select %175, %176, %165 : vector<16x64xi1>, vector<16x64xi32>
    %cst_55 = arith.constant dense<-2147483648> : vector<16xi32>
    %178 = vector.multi_reduction <maxsi>, %177, %cst_55 [1] : vector<16x64xi32> to vector<16xi32>
    %179 = vector.shape_cast %178 : vector<16xi32> to vector<16x1xi32>
    %180 = vector.broadcast %179 : vector<16x1xi32> to vector<16x64xi32>
    %181 = arith.cmpi eq, %177, %180 : vector<16x64xi32>
    %c2147483647_i32_56 = arith.constant 2147483647 : i32
    %182 = vector.broadcast %c2147483647_i32_56 : i32 to vector<16x64xi32>
    %183 = arith.select %181, %2, %182 : vector<16x64xi1>, vector<16x64xi32>
    %cst_57 = arith.constant dense<2147483647> : vector<16xi32>
    %184 = vector.multi_reduction <minsi>, %183, %cst_57 [1] : vector<16x64xi32> to vector<16xi32>
    %185 = vector.shape_cast %184 : vector<16xi32> to vector<16x1xi32>
    %186 = vector.broadcast %185 : vector<16x1xi32> to vector<16x64xi32>
    %187 = arith.cmpi eq, %2, %186 : vector<16x64xi32>
    %c-2147483648_i32_58 = arith.constant -2147483648 : i32
    %188 = vector.broadcast %c-2147483648_i32_58 : i32 to vector<16x64xi32>
    %189 = arith.select %187, %188, %177 : vector<16x64xi1>, vector<16x64xi32>
    %cst_59 = arith.constant dense<-2147483648> : vector<16xi32>
    %190 = vector.multi_reduction <maxsi>, %189, %cst_59 [1] : vector<16x64xi32> to vector<16xi32>
    %191 = vector.shape_cast %190 : vector<16xi32> to vector<16x1xi32>
    %192 = vector.broadcast %191 : vector<16x1xi32> to vector<16x64xi32>
    %193 = arith.cmpi eq, %189, %192 : vector<16x64xi32>
    %c2147483647_i32_60 = arith.constant 2147483647 : i32
    %194 = vector.broadcast %c2147483647_i32_60 : i32 to vector<16x64xi32>
    %195 = arith.select %193, %2, %194 : vector<16x64xi1>, vector<16x64xi32>
    %cst_61 = arith.constant dense<2147483647> : vector<16xi32>
    %196 = vector.multi_reduction <minsi>, %195, %cst_61 [1] : vector<16x64xi32> to vector<16xi32>
    %197 = vector.shape_cast %196 : vector<16xi32> to vector<16x1xi32>
    %198 = vector.broadcast %197 : vector<16x1xi32> to vector<16x64xi32>
    %199 = arith.cmpi eq, %2, %198 : vector<16x64xi32>
    %c-2147483648_i32_62 = arith.constant -2147483648 : i32
    %200 = vector.broadcast %c-2147483648_i32_62 : i32 to vector<16x64xi32>
    %201 = arith.select %199, %200, %189 : vector<16x64xi1>, vector<16x64xi32>
    %cst_63 = arith.constant dense<-2147483648> : vector<16xi32>
    %202 = vector.multi_reduction <maxsi>, %201, %cst_63 [1] : vector<16x64xi32> to vector<16xi32>
    %203 = vector.shape_cast %202 : vector<16xi32> to vector<16x1xi32>
    %204 = vector.broadcast %203 : vector<16x1xi32> to vector<16x64xi32>
    %205 = arith.cmpi eq, %201, %204 : vector<16x64xi32>
    %c2147483647_i32_64 = arith.constant 2147483647 : i32
    %206 = vector.broadcast %c2147483647_i32_64 : i32 to vector<16x64xi32>
    %207 = arith.select %205, %2, %206 : vector<16x64xi1>, vector<16x64xi32>
    %cst_65 = arith.constant dense<2147483647> : vector<16xi32>
    %208 = vector.multi_reduction <minsi>, %207, %cst_65 [1] : vector<16x64xi32> to vector<16xi32>
    %209 = vector.shape_cast %208 : vector<16xi32> to vector<16x1xi32>
    %210 = tpu.concatenate %23, %35, %47, %59, %71, %83, %95, %107, %119, %131, %143, %155, %167, %179, %191, %203 in 1 : vector<16x1xi32>, vector<16x1xi32>, vector<16x1xi32>, vector<16x1xi32>, vector<16x1xi32>, vector<16x1xi32>, vector<16x1xi32>, vector<16x1xi32>, vector<16x1xi32>, vector<16x1xi32>, vector<16x1xi32>, vector<16x1xi32>, vector<16x1xi32>, vector<16x1xi32>, vector<16x1xi32>, vector<16x1xi32> -> vector<16x16xi32>
    %c0_i32_66 = arith.constant 0 : i32
    %211 = vector.broadcast %c0_i32_66 : i32 to vector<16x16xi32>
    %212 = arith.cmpi slt, %210, %211 : vector<16x16xi32>
    %c2147483647_i32_67 = arith.constant 2147483647 : i32
    %213 = vector.broadcast %c2147483647_i32_67 : i32 to vector<16x16xi32>
    %214 = arith.xori %210, %213 : vector<16x16xi32>
    %215 = arith.select %212, %214, %210 : vector<16x16xi1>, vector<16x16xi32>
    %216 = tpu.bitcast %215 : vector<16x16xi32> -> vector<16x16xf32>
    %217 = tpu.concatenate %29, %41, %53, %65, %77, %89, %101, %113, %125, %137, %149, %161, %173, %185, %197, %209 in 1 : vector<16x1xi32>, vector<16x1xi32>, vector<16x1xi32>, vector<16x1xi32>, vector<16x1xi32>, vector<16x1xi32>, vector<16x1xi32>, vector<16x1xi32>, vector<16x1xi32>, vector<16x1xi32>, vector<16x1xi32>, vector<16x1xi32>, vector<16x1xi32>, vector<16x1xi32>, vector<16x1xi32>, vector<16x1xi32> -> vector<16x16xi32>
    %cst_68 = arith.constant 0.000000e+00 : f32
    %218 = vector.broadcast %cst_68 : f32 to vector<16x112xf32>
    %219 = tpu.concatenate %216, %218 in 1 : vector<16x16xf32>, vector<16x112xf32> -> vector<16x128xf32>
    %c0_i32_69 = arith.constant 0 : i32
    %220 = vector.broadcast %c0_i32_69 : i32 to vector<16x112xi32>
    %221 = tpu.concatenate %217, %220 in 1 : vector<16x16xi32>, vector<16x112xi32> -> vector<16x128xi32>
    %222 = arith.index_cast %6 : i32 to index
    %c0_70 = arith.constant 0 : index
    %223 = vector.load %arg2[%222, %c0_70] : memref<16x128xf32, #tpu.memory_space<vmem>>, vector<16x128xf32>
    tpu.vector_store %arg2[%222, %c0_70], %219 {strides = array<i32>} : memref<16x128xf32, #tpu.memory_space<vmem>>, vector<16x128xf32>,
    %224 = arith.index_cast %6 : i32 to index
    %c0_71 = arith.constant 0 : index
    %225 = vector.load %arg3[%224, %c0_71] : memref<16x128xi32, #tpu.memory_space<vmem>>, vector<16x128xi32>
    tpu.vector_store %arg3[%224, %c0_71], %221 {strides = array<i32>} : memref<16x128xi32, #tpu.memory_space<vmem>>, vector<16x128xi32>,
    %c1_i32_72 = arith.constant 1 : i32
    return
  }
  func.func @transform_0(%arg0: i32) -> (i32, i32) {
    %c0_i32 = arith.constant 0 : i32
    %c0_i32_0 = arith.constant 0 : i32
    return %arg0, %c0_i32 : i32, i32
  }
  func.func @transform_1(%arg0: i32) -> (i32, i32) {
    %c0_i32 = arith.constant 0 : i32
    %c0_i32_0 = arith.constant 0 : i32
    return %arg0, %c0_i32 : i32, i32
  }
  func.func @transform_2(%arg0: i32) -> (i32, i32) {
    %c0_i32 = arith.constant 0 : i32
    %c0_i32_0 = arith.constant 0 : i32
    return %arg0, %c0_i32 : i32, i32
  }
}

</mosaic_0001>

<llo_original>
// kernel: tpu_custom_call.1
$region0: #{tpu_custom_call.1}
  #allocation0 [shape = 'u32[]', space=smem, size = 0x4, offset = 0x4, fixed_abs, tag = 'smem constant byte address 0x4 - core index']
  #allocation1 [shape = 'u32[144,128]{1,0:T(1,128)}', space=vmem, size = 0x12000, scoped, tag = 'internal scratch']
  %s0 = inlined_call_operand.hbm [shape: f32[2,64], index: 0, kind: input, shape index: {}]
  %s1 = inlined_call_operand.hbm [shape: f32[2,128], index: 1, kind: output, shape index: {0}]
  %s2 = inlined_call_operand.hbm [shape: s32[2,128], index: 2, kind: output, shape index: {1}]
  %3 = xla_tuple %s1, %s2
  %s4 = sld [smem:[#allocation0]]
  $region26: #{tpu_custom_call.1} parent=0
    _
  %s6 = ssub.s32 1, %s4
  %s7 = scalar_select 0, %s6, %s4
  $region1: #{tpu_custom_call.1} parent=0
    #allocation2 [shape = 'u8[8192]{0}', space=vmem, size = 0x2000, scoped, tag = 'input window, operand 0, single buffered']
    #allocation3 [shape = 's32[1]{0}', space=sflag, size = 0x4, scoped, tag = 'scoped memory for tpu_custom_call.1']
    #allocation4 [shape = 's32[1]{0}', space=sflag, size = 0x4, scoped, tag = 'scoped memory for tpu_custom_call.1']
    #allocation5 [shape = 'u8[8192]{0}', space=vmem, size = 0x2000, scoped, tag = 'output window, operand 0, single buffered']
    #allocation6 [shape = 'u8[8192]{0}', space=vmem, size = 0x2000, scoped, tag = 'output window, operand 1, single buffered']
    #allocation7 [shape = 's32[1]{0}', space=sflag, size = 0x4, scoped, tag = 'scoped memory for tpu_custom_call.1']
    %8 = vsyncpa [#allocation3], 0
    %9 = vsyncpa [#allocation4], 0
    %10 = vsyncpa [#allocation7], 0
    // Predicated region
    $region2: #{tpu_custom_call.1} parent=1 // pred_check
      _
    $region3: #{tpu_custom_call.1} parent=1 // pred_check_branch
      %12 = sbr.rel (0) target = $region5
    $region4: #{tpu_custom_call.1} parent=1 // pred_region
      %s14 = ssub.s32 256, 32
      %15 = vsyncadd [#allocation3], %s14
      %s16 = sshll.u32 [#allocation2], 4
      %s17 = int_to_ptr.vmem [resolvable:$true] %s16
      %22 = dma.hbm_to_vmem [thread:$0]  %s0, 32, %s17, [#allocation3], 32, 32, 2
    $region5: #{tpu_custom_call.1} parent=1 // pred_fallthru
      _
    // Predicated region
    $region6: #{tpu_custom_call.1} parent=1 // pred_check
      _
    $region7: #{tpu_custom_call.1} parent=1 // pred_check_branch
      %24 = sbr.rel (0) target = $region9
    $region8: #{tpu_custom_call.1} parent=1 // pred_region
      %25 = dma.done [#allocation3], 256
    $region9: #{tpu_custom_call.1} parent=1 // pred_fallthru
      _
    %v26 = vlaneseq
    %v27 = vand.u32 %v26, 127
    %v28 = vld [vmem:[#allocation2] sm:$0xff]
    %v29 = vld [vmem:[#allocation2 + $0x8] sm:$0xff]
    %vm32 = vcmp.lt.s32.totalorder %v28, 0
    %vm33 = vcmp.lt.s32.totalorder %v29, 0
    %v34 = vxor.u32 %v28, 2147483647
    %v35 = vxor.u32 %v29, 2147483647
    %v36 = vsel %vm32, %v34, %v28
    %v37 = vsel %vm33, %v35, %v29
    %vm38 = vcmp.eq.s32.totalorder %v36, 4294967295
    %vm39 = vcmp.eq.s32.totalorder %v37, 4294967295
    %v40 = vsel %vm38, 0, %v36
    %v41 = vsel %vm39, 0, %v37
    %vm42 = vcmp.ne.f32.partialorder %v28, %v28
    %vm43 = vcmp.ne.f32.partialorder %v29, %v29
    %v44 = vsel %vm42, 2147483647, %v40
    %v45 = vsel %vm43, 2147483647, %v41
    %vm46 = vcmask 523264
    %v47 = vsel %vm46, %v44, 2147483648
    %v48 = vand.u32 %v47, 65535
    %v49 = vshra.s32 %v47, 16
    %v50 = vcvt.s32.f32 %v48
    %v51 = vcvt.s32.f32 %v49
    %52 = vmax.xlane.f32.xlu0 %v51
    %v53 = vpop.xlane.xlu0 %52
    %vm54 = vcmp.eq.f32.partialorder %v51, %v53
    %v55 = vsel %vm54, %v50, -inf
    %56 = vmax.xlane.f32.xlu0 %v55
    %v57 = vpop.xlane.xlu0 %56
    %v58 = vcvt.f32.s32 %v57
    %v59 = vcvt.f32.s32 %v53
    %v60 = vshll.u32 %v59, 16
    %v61 = vadd.s32 %v60, %v58
    %v62 = vsel %vm46, %v45, 2147483648
    %v63 = vand.u32 %v62, 65535
    %v64 = vshra.s32 %v62, 16
    %v65 = vcvt.s32.f32 %v63
    %v66 = vcvt.s32.f32 %v64
    %67 = vmax.xlane.f32.xlu0 %v66
    %v68 = vpop.xlane.xlu0 %67
    %vm69 = vcmp.eq.f32.partialorder %v66, %v68
    %v70 = vsel %vm69, %v65, -inf
    %71 = vmax.xlane.f32.xlu0 %v70
    %v72 = vpop.xlane.xlu0 %71
    %v73 = vcvt.f32.s32 %v72
    %v74 = vcvt.f32.s32 %v68
    %v75 = vshll.u32 %v74, 16
    %v76 = vadd.s32 %v75, %v73
    %vm77 = vcmp.eq.s32.totalorder %v44, %v61
    %vm78 = vcmp.eq.s32.totalorder %v45, %v76
    %v79 = vsel %vm77, %v27, 2147483647
    %v80 = vsel %vm78, %v27, 2147483647
    %v81 = vsel %vm46, %v79, 2147483647
    %v82 = vand.u32 %v81, 65535
    %v83 = vshra.s32 %v81, 16
    %v84 = vcvt.s32.f32 %v82
    %v85 = vcvt.s32.f32 %v83
    %86 = vmin.xlane.f32.xlu0 %v85
    %v87 = vpop.xlane.xlu0 %86
    %vm88 = vcmp.eq.f32.partialorder %v85, %v87
    %v89 = vsel %vm88, %v84, inf
    %90 = vmin.xlane.f32.xlu0 %v89
    %v91 = vpop.xlane.xlu0 %90
    %v92 = vcvt.f32.s32 %v91
    %v93 = vcvt.f32.s32 %v87
    %v94 = vshll.u32 %v93, 16
    %v95 = vadd.s32 %v94, %v92
    %v96 = vsel %vm46, %v80, 2147483647
    %v97 = vand.u32 %v96, 65535
    %v98 = vshra.s32 %v96, 16
    %v99 = vcvt.s32.f32 %v97
    %v100 = vcvt.s32.f32 %v98
    %101 = vmin.xlane.f32.xlu0 %v100
    %v102 = vpop.xlane.xlu0 %101
    %vm103 = vcmp.eq.f32.partialorder %v100, %v102
    %v104 = vsel %vm103, %v99, inf
    %105 = vmin.xlane.f32.xlu0 %v104
    %v106 = vpop.xlane.xlu0 %105
    %v107 = vcvt.f32.s32 %v106
    %v108 = vcvt.f32.s32 %v102
    %v109 = vshll.u32 %v108, 16
    %v110 = vadd.s32 %v109, %v107
    %vm111 = vcmp.eq.s32.totalorder %v27, %v95
    %vm112 = vcmp.eq.s32.totalorder %v27, %v110
    %v113 = vsel %vm111, 2147483648, %v44
    %v114 = vsel %vm112, 2147483648, %v45
    %v115 = vsel %vm46, %v113, 2147483648
    %v116 = vand.u32 %v115, 65535
    %v117 = vshra.s32 %v115, 16
    %v118 = vcvt.s32.f32 %v116
    %v119 = vcvt.s32.f32 %v117
    %120 = vmax.xlane.f32.xlu0 %v119
    %v121 = vpop.xlane.xlu0 %120
    %vm122 = vcmp.eq.f32.partialorder %v119, %v121
    %v123 = vsel %vm122, %v118, -inf
    %124 = vmax.xlane.f32.xlu0 %v123
    %v125 = vpop.xlane.xlu0 %124
    %v126 = vcvt.f32.s32 %v125
    %v127 = vcvt.f32.s32 %v121
    %v128 = vshll.u32 %v127, 16
    %v129 = vadd.s32 %v128, %v126
    %v130 = vsel %vm46, %v114, 2147483648
    %v131 = vand.u32 %v130, 65535
    %v132 = vshra.s32 %v130, 16
    %v133 = vcvt.s32.f32 %v131
    %v134 = vcvt.s32.f32 %v132
    %135 = vmax.xlane.f32.xlu0 %v134
    %v136 = vpop.xlane.xlu0 %135
    %vm137 = vcmp.eq.f32.partialorder %v134, %v136
    %v138 = vsel %vm137, %v133, -inf
    %139 = vmax.xlane.f32.xlu0 %v138
    %v140 = vpop.xlane.xlu0 %139
    %v141 = vcvt.f32.s32 %v140
    %v142 = vcvt.f32.s32 %v136
    %v143 = vshll.u32 %v142, 16
    %v144 = vadd.s32 %v143, %v141
    %vm145 = vcmp.eq.s32.totalorder %v113, %v129
    %vm146 = vcmp.eq.s32.totalorder %v114, %v144
    %v147 = vsel %vm145, %v27, 2147483647
    %v148 = vsel %vm146, %v27, 2147483647
    %v149 = vsel %vm46, %v147, 2147483647
    %v150 = vand.u32 %v149, 65535
    %v151 = vshra.s32 %v149, 16
    %v152 = vcvt.s32.f32 %v150
    %v153 = vcvt.s32.f32 %v151
    %154 = vmin.xlane.f32.xlu0 %v153
    %v155 = vpop.xlane.xlu0 %154
    %vm156 = vcmp.eq.f32.partialorder %v153, %v155
    %v157 = vsel %vm156, %v152, inf
    %158 = vmin.xlane.f32.xlu0 %v157
    %v159 = vpop.xlane.xlu0 %158
    %v160 = vcvt.f32.s32 %v159
    %v161 = vcvt.f32.s32 %v155
    %v162 = vshll.u32 %v161, 16
    %v163 = vadd.s32 %v162, %v160
    %v164 = vsel %vm46, %v148, 2147483647
    %v165 = vand.u32 %v164, 65535
    %v166 = vshra.s32 %v164, 16
    %v167 = vcvt.s32.f32 %v165
    %v168 = vcvt.s32.f32 %v166
    %169 = vmin.xlane.f32.xlu0 %v168
    %v170 = vpop.xlane.xlu0 %169
    %vm171 = vcmp.eq.f32.partialorder %v168, %v170
    %v172 = vsel %vm171, %v167, inf
    %173 = vmin.xlane.f32.xlu0 %v172
    %v174 = vpop.xlane.xlu0 %173
    %v175 = vcvt.f32.s32 %v174
    %v176 = vcvt.f32.s32 %v170
    %v177 = vshll.u32 %v176, 16
    %v178 = vadd.s32 %v177, %v175
    %vm179 = vcmp.eq.s32.totalorder %v27, %v163
    %vm180 = vcmp.eq.s32.totalorder %v27, %v178
    %v181 = vsel %vm179, 2147483648, %v113
    %v182 = vsel %vm180, 2147483648, %v114
    %v183 = vsel %vm46, %v181, 2147483648
    %v184 = vand.u32 %v183, 65535
    %v185 = vshra.s32 %v183, 16
    %v186 = vcvt.s32.f32 %v184
    %v187 = vcvt.s32.f32 %v185
    %188 = vmax.xlane.f32.xlu0 %v187
    %v189 = vpop.xlane.xlu0 %188
    %vm190 = vcmp.eq.f32.partialorder %v187, %v189
    %v191 = vsel %vm190, %v186, -inf
    %192 = vmax.xlane.f32.xlu0 %v191
    %v193 = vpop.xlane.xlu0 %192
    %v194 = vcvt.f32.s32 %v193
    %v195 = vcvt.f32.s32 %v189
    %v196 = vshll.u32 %v195, 16
    %v197 = vadd.s32 %v196, %v194
    %v198 = vsel %vm46, %v182, 2147483648
    %v199 = vand.u32 %v198, 65535
    %v200 = vshra.s32 %v198, 16
    %v201 = vcvt.s32.f32 %v199
    %v202 = vcvt.s32.f32 %v200
    %203 = vmax.xlane.f32.xlu0 %v202
    %v204 = vpop.xlane.xlu0 %203
    %vm205 = vcmp.eq.f32.partialorder %v202, %v204
    %v206 = vsel %vm205, %v201, -inf
    %207 = vmax.xlane.f32.xlu0 %v206
    %v208 = vpop.xlane.xlu0 %207
    %v209 = vcvt.f32.s32 %v208
    %v210 = vcvt.f32.s32 %v204
    %v211 = vshll.u32 %v210, 16
    %v212 = vadd.s32 %v211, %v209
    %vm213 = vcmp.eq.s32.totalorder %v181, %v197
    %vm214 = vcmp.eq.s32.totalorder %v182, %v212
    %v215 = vsel %vm213, %v27, 2147483647
    %v216 = vsel %vm214, %v27, 2147483647
    %v217 = vsel %vm46, %v215, 2147483647
    %v218 = vand.u32 %v217, 65535
    %v219 = vshra.s32 %v217, 16
    %v220 = vcvt.s32.f32 %v218
    %v221 = vcvt.s32.f32 %v219
    %222 = vmin.xlane.f32.xlu0 %v221
    %v223 = vpop.xlane.xlu0 %222
    %vm224 = vcmp.eq.f32.partialorder %v221, %v223
    %v225 = vsel %vm224, %v220, inf
    %226 = vmin.xlane.f32.xlu0 %v225
    %v227 = vpop.xlane.xlu0 %226
    %v228 = vcvt.f32.s32 %v227
    %v229 = vcvt.f32.s32 %v223
    %v230 = vshll.u32 %v229, 16
    %v231 = vadd.s32 %v230, %v228
    %v232 = vsel %vm46, %v216, 2147483647
    %v233 = vand.u32 %v232, 65535
    %v234 = vshra.s32 %v232, 16
    %v235 = vcvt.s32.f32 %v233
    %v236 = vcvt.s32.f32 %v234
    %237 = vmin.xlane.f32.xlu0 %v236
    %v238 = vpop.xlane.xlu0 %237
    %vm239 = vcmp.eq.f32.partialorder %v236, %v238
    %v240 = vsel %vm239, %v235, inf
    %241 = vmin.xlane.f32.xlu0 %v240
    %v242 = vpop.xlane.xlu0 %241
    %v243 = vcvt.f32.s32 %v242
    %v244 = vcvt.f32.s32 %v238
    %v245 = vshll.u32 %v244, 16
    %v246 = vadd.s32 %v245, %v243
    %vm247 = vcmp.eq.s32.totalorder %v27, %v231
    %vm248 = vcmp.eq.s32.totalorder %v27, %v246
    %v249 = vsel %vm247, 2147483648, %v181
    %v250 = vsel %vm248, 2147483648, %v182
    %v251 = vsel %vm46, %v249, 2147483648
    %v252 = vand.u32 %v251, 65535
    %v253 = vshra.s32 %v251, 16
    %v254 = vcvt.s32.f32 %v252
    %v255 = vcvt.s32.f32 %v253
    %256 = vmax.xlane.f32.xlu0 %v255
    %v257 = vpop.xlane.xlu0 %256
    %vm258 = vcmp.eq.f32.partialorder %v255, %v257
    %v259 = vsel %vm258, %v254, -inf
    %260 = vmax.xlane.f32.xlu0 %v259
    %v261 = vpop.xlane.xlu0 %260
    %v262 = vcvt.f32.s32 %v261
    %v263 = vcvt.f32.s32 %v257
    %v264 = vshll.u32 %v263, 16
    %v265 = vadd.s32 %v264, %v262
    %v266 = vsel %vm46, %v250, 2147483648
    %v267 = vand.u32 %v266, 65535
    %v268 = vshra.s32 %v266, 16
    %v269 = vcvt.s32.f32 %v267
    %v270 = vcvt.s32.f32 %v268
    %271 = vmax.xlane.f32.xlu0 %v270
    %v272 = vpop.xlane.xlu0 %271
    %vm273 = vcmp.eq.f32.partialorder %v270, %v272
    %v274 = vsel %vm273, %v269, -inf
    %275 = vmax.xlane.f32.xlu0 %v274
    %v276 = vpop.xlane.xlu0 %275
    %v277 = vcvt.f32.s32 %v276
    %v278 = vcvt.f32.s32 %v272
    %v279 = vshll.u32 %v278, 16
    %v280 = vadd.s32 %v279, %v277
    %vm281 = vcmp.eq.s32.totalorder %v249, %v265
    %vm282 = vcmp.eq.s32.totalorder %v250, %v280
    %v283 = vsel %vm281, %v27, 2147483647
    %v284 = vsel %vm282, %v27, 2147483647
    %v285 = vsel %vm46, %v283, 2147483647
    %v286 = vand.u32 %v285, 65535
    %v287 = vshra.s32 %v285, 16
    %v288 = vcvt.s32.f32 %v286
    %v289 = vcvt.s32.f32 %v287
    %290 = vmin.xlane.f32.xlu0 %v289
    %v291 = vpop.xlane.xlu0 %290
    %vm292 = vcmp.eq.f32.partialorder %v289, %v291
    %v293 = vsel %vm292, %v288, inf
    %294 = vmin.xlane.f32.xlu0 %v293
    %v295 = vpop.xlane.xlu0 %294
    %v296 = vcvt.f32.s32 %v295
    %v297 = vcvt.f32.s32 %v291
    %v298 = vshll.u32 %v297, 16
    %v299 = vadd.s32 %v298, %v296
    %v300 = vsel %vm46, %v284, 2147483647
    %v301 = vand.u32 %v300, 65535
    %v302 = vshra.s32 %v300, 16
    %v303 = vcvt.s32.f32 %v301
    %v304 = vcvt.s32.f32 %v302
    %305 = vmin.xlane.f32.xlu0 %v304
    %v306 = vpop.xlane.xlu0 %305
    %vm307 = vcmp.eq.f32.partialorder %v304, %v306
    %v308 = vsel %vm307, %v303, inf
    %309 = vmin.xlane.f32.xlu0 %v308
    %v310 = vpop.xlane.xlu0 %309
    %v311 = vcvt.f32.s32 %v310
    %v312 = vcvt.f32.s32 %v306
    %v313 = vshll.u32 %v312, 16
    %v314 = vadd.s32 %v313, %v311
    %vm315 = vcmp.eq.s32.totalorder %v27, %v299
    %vm316 = vcmp.eq.s32.totalorder %v27, %v314
    %v317 = vsel %vm315, 2147483648, %v249
    %v318 = vsel %vm316, 2147483648, %v250
    %v319 = vsel %vm46, %v317, 2147483648
    %v320 = vand.u32 %v319, 65535
    %v321 = vshra.s32 %v319, 16
    %v322 = vcvt.s32.f32 %v320
    %v323 = vcvt.s32.f32 %v321
    %324 = vmax.xlane.f32.xlu0 %v323
    %v325 = vpop.xlane.xlu0 %324
    %vm326 = vcmp.eq.f32.partialorder %v323, %v325
    %v327 = vsel %vm326, %v322, -inf
    %328 = vmax.xlane.f32.xlu0 %v327
    %v329 = vpop.xlane.xlu0 %328
    %v330 = vcvt.f32.s32 %v329
    %v331 = vcvt.f32.s32 %v325
    %v332 = vshll.u32 %v331, 16
    %v333 = vadd.s32 %v332, %v330
    %v334 = vsel %vm46, %v318, 2147483648
    %v335 = vand.u32 %v334, 65535
    %v336 = vshra.s32 %v334, 16
    %v337 = vcvt.s32.f32 %v335
    %v338 = vcvt.s32.f32 %v336
    %339 = vmax.xlane.f32.xlu0 %v338
    %v340 = vpop.xlane.xlu0 %339
    %vm341 = vcmp.eq.f32.partialorder %v338, %v340
    %v342 = vsel %vm341, %v337, -inf
    %343 = vmax.xlane.f32.xlu0 %v342
    %v344 = vpop.xlane.xlu0 %343
    %v345 = vcvt.f32.s32 %v344
    %v346 = vcvt.f32.s32 %v340
    %v347 = vshll.u32 %v346, 16
    %v348 = vadd.s32 %v347, %v345
    %vm349 = vcmp.eq.s32.totalorder %v317, %v333
    %vm350 = vcmp.eq.s32.totalorder %v318, %v348
    %v351 = vsel %vm349, %v27, 2147483647
    %v352 = vsel %vm350, %v27, 2147483647
    %v353 = vsel %vm46, %v351, 2147483647
    %v354 = vand.u32 %v353, 65535
    %v355 = vshra.s32 %v353, 16
    %v356 = vcvt.s32.f32 %v354
    %v357 = vcvt.s32.f32 %v355
    %358 = vmin.xlane.f32.xlu0 %v357
    %v359 = vpop.xlane.xlu0 %358
    %vm360 = vcmp.eq.f32.partialorder %v357, %v359
    %v361 = vsel %vm360, %v356, inf
    %362 = vmin.xlane.f32.xlu0 %v361
    %v363 = vpop.xlane.xlu0 %362
    %v364 = vcvt.f32.s32 %v363
    %v365 = vcvt.f32.s32 %v359
    %v366 = vshll.u32 %v365, 16
    %v367 = vadd.s32 %v366, %v364
    %v368 = vsel %vm46, %v352, 2147483647
    %v369 = vand.u32 %v368, 65535
    %v370 = vshra.s32 %v368, 16
    %v371 = vcvt.s32.f32 %v369
    %v372 = vcvt.s32.f32 %v370
    %373 = vmin.xlane.f32.xlu0 %v372
    %v374 = vpop.xlane.xlu0 %373
    %vm375 = vcmp.eq.f32.partialorder %v372, %v374
    %v376 = vsel %vm375, %v371, inf
    %377 = vmin.xlane.f32.xlu0 %v376
    %v378 = vpop.xlane.xlu0 %377
    %v379 = vcvt.f32.s32 %v378
    %v380 = vcvt.f32.s32 %v374
    %v381 = vshll.u32 %v380, 16
    %v382 = vadd.s32 %v381, %v379
    %vm383 = vcmp.eq.s32.totalorder %v27, %v367
    %vm384 = vcmp.eq.s32.totalorder %v27, %v382
    %v385 = vsel %vm383, 2147483648, %v317
    %v386 = vsel %vm384, 2147483648, %v318
    %v387 = vsel %vm46, %v385, 2147483648
    %v388 = vand.u32 %v387, 65535
    %v389 = vshra.s32 %v387, 16
    %v390 = vcvt.s32.f32 %v388
    %v391 = vcvt.s32.f32 %v389
    %392 = vmax.xlane.f32.xlu0 %v391
    %v393 = vpop.xlane.xlu0 %392
    %vm394 = vcmp.eq.f32.partialorder %v391, %v393
    %v395 = vsel %vm394, %v390, -inf
    %396 = vmax.xlane.f32.xlu0 %v395
    %v397 = vpop.xlane.xlu0 %396
    %v398 = vcvt.f32.s32 %v397
    %v399 = vcvt.f32.s32 %v393
    %v400 = vshll.u32 %v399, 16
    %v401 = vadd.s32 %v400, %v398
    %v402 = vsel %vm46, %v386, 2147483648
    %v403 = vand.u32 %v402, 65535
    %v404 = vshra.s32 %v402, 16
    %v405 = vcvt.s32.f32 %v403
    %v406 = vcvt.s32.f32 %v404
    %407 = vmax.xlane.f32.xlu0 %v406
    %v408 = vpop.xlane.xlu0 %407
    %vm409 = vcmp.eq.f32.partialorder %v406, %v408
    %v410 = vsel %vm409, %v405, -inf
    %411 = vmax.xlane.f32.xlu0 %v410
    %v412 = vpop.xlane.xlu0 %411
    %v413 = vcvt.f32.s32 %v412
    %v414 = vcvt.f32.s32 %v408
    %v415 = vshll.u32 %v414, 16
    %v416 = vadd.s32 %v415, %v413
    %vm417 = vcmp.eq.s32.totalorder %v385, %v401
    %vm418 = vcmp.eq.s32.totalorder %v386, %v416
    %v419 = vsel %vm417, %v27, 2147483647
    %v420 = vsel %vm418, %v27, 2147483647
    %v421 = vsel %vm46, %v419, 2147483647
    %v422 = vand.u32 %v421, 65535
    %v423 = vshra.s32 %v421, 16
    %v424 = vcvt.s32.f32 %v422
    %v425 = vcvt.s32.f32 %v423
    %426 = vmin.xlane.f32.xlu0 %v425
    %v427 = vpop.xlane.xlu0 %426
    %vm428 = vcmp.eq.f32.partialorder %v425, %v427
    %v429 = vsel %vm428, %v424, inf
    %430 = vmin.xlane.f32.xlu0 %v429
    %v431 = vpop.xlane.xlu0 %430
    %v432 = vcvt.f32.s32 %v431
    %v433 = vcvt.f32.s32 %v427
    %v434 = vshll.u32 %v433, 16
    %v435 = vadd.s32 %v434, %v432
    %v436 = vsel %vm46, %v420, 2147483647
    %v437 = vand.u32 %v436, 65535
    %v438 = vshra.s32 %v436, 16
    %v439 = vcvt.s32.f32 %v437
    %v440 = vcvt.s32.f32 %v438
    %441 = vmin.xlane.f32.xlu0 %v440
    %v442 = vpop.xlane.xlu0 %441
    %vm443 = vcmp.eq.f32.partialorder %v440, %v442
    %v444 = vsel %vm443, %v439, inf
    %445 = vmin.xlane.f32.xlu0 %v444
    %v446 = vpop.xlane.xlu0 %445
    %v447 = vcvt.f32.s32 %v446
    %v448 = vcvt.f32.s32 %v442
    %v449 = vshll.u32 %v448, 16
    %v450 = vadd.s32 %v449, %v447
    %vm451 = vcmp.eq.s32.totalorder %v27, %v435
    %vm452 = vcmp.eq.s32.totalorder %v27, %v450
    %v453 = vsel %vm451, 2147483648, %v385
    %v454 = vsel %vm452, 2147483648, %v386
    %v455 = vsel %vm46, %v453, 2147483648
    %v456 = vand.u32 %v455, 65535
    %v457 = vshra.s32 %v455, 16
    %v458 = vcvt.s32.f32 %v456
    %v459 = vcvt.s32.f32 %v457
    %460 = vmax.xlane.f32.xlu0 %v459
    %v461 = vpop.xlane.xlu0 %460
    %vm462 = vcmp.eq.f32.partialorder %v459, %v461
    %v463 = vsel %vm462, %v458, -inf
    %464 = vmax.xlane.f32.xlu0 %v463
    %v465 = vpop.xlane.xlu0 %464
    %v466 = vcvt.f32.s32 %v465
    %v467 = vcvt.f32.s32 %v461
    %v468 = vshll.u32 %v467, 16
    %v469 = vadd.s32 %v468, %v466
    %v470 = vsel %vm46, %v454, 2147483648
    %v471 = vand.u32 %v470, 65535
    %v472 = vshra.s32 %v470, 16
    %v473 = vcvt.s32.f32 %v471
    %v474 = vcvt.s32.f32 %v472
    %475 = vmax.xlane.f32.xlu0 %v474
    %v476 = vpop.xlane.xlu0 %475
    %vm477 = vcmp.eq.f32.partialorder %v474, %v476
    %v478 = vsel %vm477, %v473, -inf
    %479 = vmax.xlane.f32.xlu0 %v478
    %v480 = vpop.xlane.xlu0 %479
    %v481 = vcvt.f32.s32 %v480
    %v482 = vcvt.f32.s32 %v476
    %v483 = vshll.u32 %v482, 16
    %v484 = vadd.s32 %v483, %v481
    %vm485 = vcmp.eq.s32.totalorder %v453, %v469
    %vm486 = vcmp.eq.s32.totalorder %v454, %v484
    %v487 = vsel %vm485, %v27, 2147483647
    %v488 = vsel %vm486, %v27, 2147483647
    %v489 = vsel %vm46, %v487, 2147483647
    %v490 = vand.u32 %v489, 65535
    %v491 = vshra.s32 %v489, 16
    %v492 = vcvt.s32.f32 %v490
    %v493 = vcvt.s32.f32 %v491
    %494 = vmin.xlane.f32.xlu0 %v493
    %v495 = vpop.xlane.xlu0 %494
    %vm496 = vcmp.eq.f32.partialorder %v493, %v495
    %v497 = vsel %vm496, %v492, inf
    %498 = vmin.xlane.f32.xlu0 %v497
    %v499 = vpop.xlane.xlu0 %498
    %v500 = vcvt.f32.s32 %v499
    %v501 = vcvt.f32.s32 %v495
    %v502 = vshll.u32 %v501, 16
    %v503 = vadd.s32 %v502, %v500
    %v504 = vsel %vm46, %v488, 2147483647
    %v505 = vand.u32 %v504, 65535
    %v506 = vshra.s32 %v504, 16
    %v507 = vcvt.s32.f32 %v505
    %v508 = vcvt.s32.f32 %v506
    %509 = vmin.xlane.f32.xlu0 %v508
    %v510 = vpop.xlane.xlu0 %509
    %vm511 = vcmp.eq.f32.partialorder %v508, %v510
    %v512 = vsel %vm511, %v507, inf
    %513 = vmin.xlane.f32.xlu0 %v512
    %v514 = vpop.xlane.xlu0 %513
    %v515 = vcvt.f32.s32 %v514
    %v516 = vcvt.f32.s32 %v510
    %v517 = vshll.u32 %v516, 16
    %v518 = vadd.s32 %v517, %v515
    %vm519 = vcmp.eq.s32.totalorder %v27, %v503
    %vm520 = vcmp.eq.s32.totalorder %v27, %v518
    %v521 = vsel %vm519, 2147483648, %v453
    %v522 = vsel %vm520, 2147483648, %v454
    %v523 = vsel %vm46, %v521, 2147483648
    %v524 = vand.u32 %v523, 65535
    %v525 = vshra.s32 %v523, 16
    %v526 = vcvt.s32.f32 %v524
    %v527 = vcvt.s32.f32 %v525
    %528 = vmax.xlane.f32.xlu0 %v527
    %v529 = vpop.xlane.xlu0 %528
    %vm530 = vcmp.eq.f32.partialorder %v527, %v529
    %v531 = vsel %vm530, %v526, -inf
    %532 = vmax.xlane.f32.xlu0 %v531
    %v533 = vpop.xlane.xlu0 %532
    %v534 = vcvt.f32.s32 %v533
    %v535 = vcvt.f32.s32 %v529
    %v536 = vshll.u32 %v535, 16
    %v537 = vadd.s32 %v536, %v534
    %v538 = vsel %vm46, %v522, 2147483648
    %v539 = vand.u32 %v538, 65535
    %v540 = vshra.s32 %v538, 16
    %v541 = vcvt.s32.f32 %v539
    %v542 = vcvt.s32.f32 %v540
    %543 = vmax.xlane.f32.xlu0 %v542
    %v544 = vpop.xlane.xlu0 %543
    %vm545 = vcmp.eq.f32.partialorder %v542, %v544
    %v546 = vsel %vm545, %v541, -inf
    %547 = vmax.xlane.f32.xlu0 %v546
    %v548 = vpop.xlane.xlu0 %547
    %v549 = vcvt.f32.s32 %v548
    %v550 = vcvt.f32.s32 %v544
    %v551 = vshll.u32 %v550, 16
    %v552 = vadd.s32 %v551, %v549
    %vm553 = vcmp.eq.s32.totalorder %v521, %v537
    %vm554 = vcmp.eq.s32.totalorder %v522, %v552
    %v555 = vsel %vm553, %v27, 2147483647
    %v556 = vsel %vm554, %v27, 2147483647
    %v557 = vsel %vm46, %v555, 2147483647
    %v558 = vand.u32 %v557, 65535
    %v559 = vshra.s32 %v557, 16
    %v560 = vcvt.s32.f32 %v558
    %v561 = vcvt.s32.f32 %v559
    %562 = vmin.xlane.f32.xlu0 %v561
    %v563 = vpop.xlane.xlu0 %562
    %vm564 = vcmp.eq.f32.partialorder %v561, %v563
    %v565 = vsel %vm564, %v560, inf
    %566 = vmin.xlane.f32.xlu0 %v565
    %v567 = vpop.xlane.xlu0 %566
    %v568 = vcvt.f32.s32 %v567
    %v569 = vcvt.f32.s32 %v563
    %v570 = vshll.u32 %v569, 16
    %v571 = vadd.s32 %v570, %v568
    %v572 = vsel %vm46, %v556, 2147483647
    %v573 = vand.u32 %v572, 65535
    %v574 = vshra.s32 %v572, 16
    %v575 = vcvt.s32.f32 %v573
    %v576 = vcvt.s32.f32 %v574
    %577 = vmin.xlane.f32.xlu0 %v576
    %v578 = vpop.xlane.xlu0 %577
    %vm579 = vcmp.eq.f32.partialorder %v576, %v578
    %v580 = vsel %vm579, %v575, inf
    %581 = vmin.xlane.f32.xlu0 %v580
    %v582 = vpop.xlane.xlu0 %581
    %v583 = vcvt.f32.s32 %v582
    %v584 = vcvt.f32.s32 %v578
    %v585 = vshll.u32 %v584, 16
    %v586 = vadd.s32 %v585, %v583
    %vm587 = vcmp.eq.s32.totalorder %v27, %v571
    %vm588 = vcmp.eq.s32.totalorder %v27, %v586
    %v589 = vsel %vm587, 2147483648, %v521
    %v590 = vsel %vm588, 2147483648, %v522
    %v591 = vsel %vm46, %v589, 2147483648
    %v592 = vand.u32 %v591, 65535
    %v593 = vshra.s32 %v591, 16
    %v594 = vcvt.s32.f32 %v592
    %v595 = vcvt.s32.f32 %v593
    %596 = vmax.xlane.f32.xlu0 %v595
    %v597 = vpop.xlane.xlu0 %596
    %vm598 = vcmp.eq.f32.partialorder %v595, %v597
    %v599 = vsel %vm598, %v594, -inf
    %600 = vmax.xlane.f32.xlu0 %v599
    %v601 = vpop.xlane.xlu0 %600
    %v602 = vcvt.f32.s32 %v601
    %v603 = vcvt.f32.s32 %v597
    %v604 = vshll.u32 %v603, 16
    %v605 = vadd.s32 %v604, %v602
    %v606 = vsel %vm46, %v590, 2147483648
    %v607 = vand.u32 %v606, 65535
    %v608 = vshra.s32 %v606, 16
    %v609 = vcvt.s32.f32 %v607
    %v610 = vcvt.s32.f32 %v608
    %611 = vmax.xlane.f32.xlu0 %v610
    %v612 = vpop.xlane.xlu0 %611
    %vm613 = vcmp.eq.f32.partialorder %v610, %v612
    %v614 = vsel %vm613, %v609, -inf
    %615 = vmax.xlane.f32.xlu0 %v614
    %v616 = vpop.xlane.xlu0 %615
    %v617 = vcvt.f32.s32 %v616
    %v618 = vcvt.f32.s32 %v612
    %v619 = vshll.u32 %v618, 16
    %v620 = vadd.s32 %v619, %v617
    %vm621 = vcmp.eq.s32.totalorder %v589, %v605
    %vm622 = vcmp.eq.s32.totalorder %v590, %v620
    %v623 = vsel %vm621, %v27, 2147483647
    %v624 = vsel %vm622, %v27, 2147483647
    %v625 = vsel %vm46, %v623, 2147483647
    %v626 = vand.u32 %v625, 65535
    %v627 = vshra.s32 %v625, 16
    %v628 = vcvt.s32.f32 %v626
    %v629 = vcvt.s32.f32 %v627
    %630 = vmin.xlane.f32.xlu0 %v629
    %v631 = vpop.xlane.xlu0 %630
    %vm632 = vcmp.eq.f32.partialorder %v629, %v631
    %v633 = vsel %vm632, %v628, inf
    %634 = vmin.xlane.f32.xlu0 %v633
    %v635 = vpop.xlane.xlu0 %634
    %v636 = vcvt.f32.s32 %v635
    %v637 = vcvt.f32.s32 %v631
    %v638 = vshll.u32 %v637, 16
    %v639 = vadd.s32 %v638, %v636
    %v640 = vsel %vm46, %v624, 2147483647
    %v641 = vand.u32 %v640, 65535
    %v642 = vshra.s32 %v640, 16
    %v643 = vcvt.s32.f32 %v641
    %v644 = vcvt.s32.f32 %v642
    %645 = vmin.xlane.f32.xlu0 %v644
    %v646 = vpop.xlane.xlu0 %645
    %vm647 = vcmp.eq.f32.partialorder %v644, %v646
    %v648 = vsel %vm647, %v643, inf
    %649 = vmin.xlane.f32.xlu0 %v648
    %v650 = vpop.xlane.xlu0 %649
    %v651 = vcvt.f32.s32 %v650
    %v652 = vcvt.f32.s32 %v646
    %v653 = vshll.u32 %v652, 16
    %v654 = vadd.s32 %v653, %v651
    %vm655 = vcmp.eq.s32.totalorder %v27, %v639
    %vm656 = vcmp.eq.s32.totalorder %v27, %v654
    %v657 = vsel %vm655, 2147483648, %v589
    %v658 = vsel %vm656, 2147483648, %v590
    %v659 = vsel %vm46, %v657, 2147483648
    %v660 = vand.u32 %v659, 65535
    %v661 = vshra.s32 %v659, 16
    %v662 = vcvt.s32.f32 %v660
    %v663 = vcvt.s32.f32 %v661
    %664 = vmax.xlane.f32.xlu0 %v663
    %v665 = vpop.xlane.xlu0 %664
    %vm666 = vcmp.eq.f32.partialorder %v663, %v665
    %v667 = vsel %vm666, %v662, -inf
    %668 = vmax.xlane.f32.xlu0 %v667
    %v669 = vpop.xlane.xlu0 %668
    %v670 = vcvt.f32.s32 %v669
    %v671 = vcvt.f32.s32 %v665
    %v672 = vshll.u32 %v671, 16
    %v673 = vadd.s32 %v672, %v670
    %v674 = vsel %vm46, %v658, 2147483648
    %v675 = vand.u32 %v674, 65535
    %v676 = vshra.s32 %v674, 16
    %v677 = vcvt.s32.f32 %v675
    %v678 = vcvt.s32.f32 %v676
    %679 = vmax.xlane.f32.xlu0 %v678
    %v680 = vpop.xlane.xlu0 %679
    %vm681 = vcmp.eq.f32.partialorder %v678, %v680
    %v682 = vsel %vm681, %v677, -inf
    %683 = vmax.xlane.f32.xlu0 %v682
    %v684 = vpop.xlane.xlu0 %683
    %v685 = vcvt.f32.s32 %v684
    %v686 = vcvt.f32.s32 %v680
    %v687 = vshll.u32 %v686, 16
    %v688 = vadd.s32 %v687, %v685
    %vm689 = vcmp.eq.s32.totalorder %v657, %v673
    %vm690 = vcmp.eq.s32.totalorder %v658, %v688
    %v691 = vsel %vm689, %v27, 2147483647
    %v692 = vsel %vm690, %v27, 2147483647
    %v693 = vsel %vm46, %v691, 2147483647
    %v694 = vand.u32 %v693, 65535
    %v695 = vshra.s32 %v693, 16
    %v696 = vcvt.s32.f32 %v694
    %v697 = vcvt.s32.f32 %v695
    %698 = vmin.xlane.f32.xlu0 %v697
    %v699 = vpop.xlane.xlu0 %698
    %vm700 = vcmp.eq.f32.partialorder %v697, %v699
    %v701 = vsel %vm700, %v696, inf
    %702 = vmin.xlane.f32.xlu0 %v701
    %v703 = vpop.xlane.xlu0 %702
    %v704 = vcvt.f32.s32 %v703
    %v705 = vcvt.f32.s32 %v699
    %v706 = vshll.u32 %v705, 16
    %v707 = vadd.s32 %v706, %v704
    %v708 = vsel %vm46, %v692, 2147483647
    %v709 = vand.u32 %v708, 65535
    %v710 = vshra.s32 %v708, 16
    %v711 = vcvt.s32.f32 %v709
    %v712 = vcvt.s32.f32 %v710
    %713 = vmin.xlane.f32.xlu0 %v712
    %v714 = vpop.xlane.xlu0 %713
    %vm715 = vcmp.eq.f32.partialorder %v712, %v714
    %v716 = vsel %vm715, %v711, inf
    %717 = vmin.xlane.f32.xlu0 %v716
    %v718 = vpop.xlane.xlu0 %717
    %v719 = vcvt.f32.s32 %v718
    %v720 = vcvt.f32.s32 %v714
    %v721 = vshll.u32 %v720, 16
    %v722 = vadd.s32 %v721, %v719
    %vm723 = vcmp.eq.s32.totalorder %v27, %v707
    %vm724 = vcmp.eq.s32.totalorder %v27, %v722
    %v725 = vsel %vm723, 2147483648, %v657
    %v726 = vsel %vm724, 2147483648, %v658
    %v727 = vsel %vm46, %v725, 2147483648
    %v728 = vand.u32 %v727, 65535
    %v729 = vshra.s32 %v727, 16
    %v730 = vcvt.s32.f32 %v728
    %v731 = vcvt.s32.f32 %v729
    %732 = vmax.xlane.f32.xlu0 %v731
    %v733 = vpop.xlane.xlu0 %732
    %vm734 = vcmp.eq.f32.partialorder %v731, %v733
    %v735 = vsel %vm734, %v730, -inf
    %736 = vmax.xlane.f32.xlu0 %v735
    %v737 = vpop.xlane.xlu0 %736
    %v738 = vcvt.f32.s32 %v737
    %v739 = vcvt.f32.s32 %v733
    %v740 = vshll.u32 %v739, 16
    %v741 = vadd.s32 %v740, %v738
    %v742 = vsel %vm46, %v726, 2147483648
    %v743 = vand.u32 %v742, 65535
    %v744 = vshra.s32 %v742, 16
    %v745 = vcvt.s32.f32 %v743
    %v746 = vcvt.s32.f32 %v744
    %747 = vmax.xlane.f32.xlu0 %v746
    %v748 = vpop.xlane.xlu0 %747
    %vm749 = vcmp.eq.f32.partialorder %v746, %v748
    %v750 = vsel %vm749, %v745, -inf
    %751 = vmax.xlane.f32.xlu0 %v750
    %v752 = vpop.xlane.xlu0 %751
    %v753 = vcvt.f32.s32 %v752
    %v754 = vcvt.f32.s32 %v748
    %v755 = vshll.u32 %v754, 16
    %v756 = vadd.s32 %v755, %v753
    %vm757 = vcmp.eq.s32.totalorder %v725, %v741
    %vm758 = vcmp.eq.s32.totalorder %v726, %v756
    %v759 = vsel %vm757, %v27, 2147483647
    %v760 = vsel %vm758, %v27, 2147483647
    %v761 = vsel %vm46, %v759, 2147483647
    %v762 = vand.u32 %v761, 65535
    %v763 = vshra.s32 %v761, 16
    %v764 = vcvt.s32.f32 %v762
    %v765 = vcvt.s32.f32 %v763
    %766 = vmin.xlane.f32.xlu0 %v765
    %v767 = vpop.xlane.xlu0 %766
    %vm768 = vcmp.eq.f32.partialorder %v765, %v767
    %v769 = vsel %vm768, %v764, inf
    %770 = vmin.xlane.f32.xlu0 %v769
    %v771 = vpop.xlane.xlu0 %770
    %v772 = vcvt.f32.s32 %v771
    %v773 = vcvt.f32.s32 %v767
    %v774 = vshll.u32 %v773, 16
    %v775 = vadd.s32 %v774, %v772
    %v776 = vsel %vm46, %v760, 2147483647
    %v777 = vand.u32 %v776, 65535
    %v778 = vshra.s32 %v776, 16
    %v779 = vcvt.s32.f32 %v777
    %v780 = vcvt.s32.f32 %v778
    %781 = vmin.xlane.f32.xlu0 %v780
    %v782 = vpop.xlane.xlu0 %781
    %vm783 = vcmp.eq.f32.partialorder %v780, %v782
    %v784 = vsel %vm783, %v779, inf
    %785 = vmin.xlane.f32.xlu0 %v784
    %v786 = vpop.xlane.xlu0 %785
    %v787 = vcvt.f32.s32 %v786
    %v788 = vcvt.f32.s32 %v782
    %v789 = vshll.u32 %v788, 16
    %v790 = vadd.s32 %v789, %v787
    %vm791 = vcmp.eq.s32.totalorder %v27, %v775
    %vm792 = vcmp.eq.s32.totalorder %v27, %v790
    %v793 = vsel %vm791, 2147483648, %v725
    %v794 = vsel %vm792, 2147483648, %v726
    %v795 = vsel %vm46, %v793, 2147483648
    %v796 = vand.u32 %v795, 65535
    %v797 = vshra.s32 %v795, 16
    %v798 = vcvt.s32.f32 %v796
    %v799 = vcvt.s32.f32 %v797
    %800 = vmax.xlane.f32.xlu0 %v799
    %v801 = vpop.xlane.xlu0 %800
    %vm802 = vcmp.eq.f32.partialorder %v799, %v801
    %v803 = vsel %vm802, %v798, -inf
    %804 = vmax.xlane.f32.xlu0 %v803
    %v805 = vpop.xlane.xlu0 %804
    %v806 = vcvt.f32.s32 %v805
    %v807 = vcvt.f32.s32 %v801
    %v808 = vshll.u32 %v807, 16
    %v809 = vadd.s32 %v808, %v806
    %v810 = vsel %vm46, %v794, 2147483648
    %v811 = vand.u32 %v810, 65535
    %v812 = vshra.s32 %v810, 16
    %v813 = vcvt.s32.f32 %v811
    %v814 = vcvt.s32.f32 %v812
    %815 = vmax.xlane.f32.xlu0 %v814
    %v816 = vpop.xlane.xlu0 %815
    %vm817 = vcmp.eq.f32.partialorder %v814, %v816
    %v818 = vsel %vm817, %v813, -inf
    %819 = vmax.xlane.f32.xlu0 %v818
    %v820 = vpop.xlane.xlu0 %819
    %v821 = vcvt.f32.s32 %v820
    %v822 = vcvt.f32.s32 %v816
    %v823 = vshll.u32 %v822, 16
    %v824 = vadd.s32 %v823, %v821
    %vm825 = vcmp.eq.s32.totalorder %v793, %v809
    %vm826 = vcmp.eq.s32.totalorder %v794, %v824
    %v827 = vsel %vm825, %v27, 2147483647
    %v828 = vsel %vm826, %v27, 2147483647
    %v829 = vsel %vm46, %v827, 2147483647
    %v830 = vand.u32 %v829, 65535
    %v831 = vshra.s32 %v829, 16
    %v832 = vcvt.s32.f32 %v830
    %v833 = vcvt.s32.f32 %v831
    %834 = vmin.xlane.f32.xlu0 %v833
    %v835 = vpop.xlane.xlu0 %834
    %vm836 = vcmp.eq.f32.partialorder %v833, %v835
    %v837 = vsel %vm836, %v832, inf
    %838 = vmin.xlane.f32.xlu0 %v837
    %v839 = vpop.xlane.xlu0 %838
    %v840 = vcvt.f32.s32 %v839
    %v841 = vcvt.f32.s32 %v835
    %v842 = vshll.u32 %v841, 16
    %v843 = vadd.s32 %v842, %v840
    %v844 = vsel %vm46, %v828, 2147483647
    %v845 = vand.u32 %v844, 65535
    %v846 = vshra.s32 %v844, 16
    %v847 = vcvt.s32.f32 %v845
    %v848 = vcvt.s32.f32 %v846
    %849 = vmin.xlane.f32.xlu0 %v848
    %v850 = vpop.xlane.xlu0 %849
    %vm851 = vcmp.eq.f32.partialorder %v848, %v850
    %v852 = vsel %vm851, %v847, inf
    %853 = vmin.xlane.f32.xlu0 %v852
    %v854 = vpop.xlane.xlu0 %853
    %v855 = vcvt.f32.s32 %v854
    %v856 = vcvt.f32.s32 %v850
    %v857 = vshll.u32 %v856, 16
    %v858 = vadd.s32 %v857, %v855
    %vm859 = vcmp.eq.s32.totalorder %v27, %v843
    %vm860 = vcmp.eq.s32.totalorder %v27, %v858
    %v861 = vsel %vm859, 2147483648, %v793
    %v862 = vsel %vm860, 2147483648, %v794
    %v863 = vsel %vm46, %v861, 2147483648
    %v864 = vand.u32 %v863, 65535
    %v865 = vshra.s32 %v863, 16
    %v866 = vcvt.s32.f32 %v864
    %v867 = vcvt.s32.f32 %v865
    %868 = vmax.xlane.f32.xlu0 %v867
    %v869 = vpop.xlane.xlu0 %868
    %vm870 = vcmp.eq.f32.partialorder %v867, %v869
    %v871 = vsel %vm870, %v866, -inf
    %872 = vmax.xlane.f32.xlu0 %v871
    %v873 = vpop.xlane.xlu0 %872
    %v874 = vcvt.f32.s32 %v873
    %v875 = vcvt.f32.s32 %v869
    %v876 = vshll.u32 %v875, 16
    %v877 = vadd.s32 %v876, %v874
    %v878 = vsel %vm46, %v862, 2147483648
    %v879 = vand.u32 %v878, 65535
    %v880 = vshra.s32 %v878, 16
    %v881 = vcvt.s32.f32 %v879
    %v882 = vcvt.s32.f32 %v880
    %883 = vmax.xlane.f32.xlu0 %v882
    %v884 = vpop.xlane.xlu0 %883
    %vm885 = vcmp.eq.f32.partialorder %v882, %v884
    %v886 = vsel %vm885, %v881, -inf
    %887 = vmax.xlane.f32.xlu0 %v886
    %v888 = vpop.xlane.xlu0 %887
    %v889 = vcvt.f32.s32 %v888
    %v890 = vcvt.f32.s32 %v884
    %v891 = vshll.u32 %v890, 16
    %v892 = vadd.s32 %v891, %v889
    %vm893 = vcmp.eq.s32.totalorder %v861, %v877
    %vm894 = vcmp.eq.s32.totalorder %v862, %v892
    %v895 = vsel %vm893, %v27, 2147483647
    %v896 = vsel %vm894, %v27, 2147483647
    %v897 = vsel %vm46, %v895, 2147483647
    %v898 = vand.u32 %v897, 65535
    %v899 = vshra.s32 %v897, 16
    %v900 = vcvt.s32.f32 %v898
    %v901 = vcvt.s32.f32 %v899
    %902 = vmin.xlane.f32.xlu0 %v901
    %v903 = vpop.xlane.xlu0 %902
    %vm904 = vcmp.eq.f32.partialorder %v901, %v903
    %v905 = vsel %vm904, %v900, inf
    %906 = vmin.xlane.f32.xlu0 %v905
    %v907 = vpop.xlane.xlu0 %906
    %v908 = vcvt.f32.s32 %v907
    %v909 = vcvt.f32.s32 %v903
    %v910 = vshll.u32 %v909, 16
    %v911 = vadd.s32 %v910, %v908
    %v912 = vsel %vm46, %v896, 2147483647
    %v913 = vand.u32 %v912, 65535
    %v914 = vshra.s32 %v912, 16
    %v915 = vcvt.s32.f32 %v913
    %v916 = vcvt.s32.f32 %v914
    %917 = vmin.xlane.f32.xlu0 %v916
    %v918 = vpop.xlane.xlu0 %917
    %vm919 = vcmp.eq.f32.partialorder %v916, %v918
    %v920 = vsel %vm919, %v915, inf
    %921 = vmin.xlane.f32.xlu0 %v920
    %v922 = vpop.xlane.xlu0 %921
    %v923 = vcvt.f32.s32 %v922
    %v924 = vcvt.f32.s32 %v918
    %v925 = vshll.u32 %v924, 16
    %v926 = vadd.s32 %v925, %v923
    %vm927 = vcmp.eq.s32.totalorder %v27, %v911
    %vm928 = vcmp.eq.s32.totalorder %v27, %v926
    %v929 = vsel %vm927, 2147483648, %v861
    %v930 = vsel %vm928, 2147483648, %v862
    %v931 = vsel %vm46, %v929, 2147483648
    %v932 = vand.u32 %v931, 65535
    %v933 = vshra.s32 %v931, 16
    %v934 = vcvt.s32.f32 %v932
    %v935 = vcvt.s32.f32 %v933
    %936 = vmax.xlane.f32.xlu0 %v935
    %v937 = vpop.xlane.xlu0 %936
    %vm938 = vcmp.eq.f32.partialorder %v935, %v937
    %v939 = vsel %vm938, %v934, -inf
    %940 = vmax.xlane.f32.xlu0 %v939
    %v941 = vpop.xlane.xlu0 %940
    %v942 = vcvt.f32.s32 %v941
    %v943 = vcvt.f32.s32 %v937
    %v944 = vshll.u32 %v943, 16
    %v945 = vadd.s32 %v944, %v942
    %v946 = vsel %vm46, %v930, 2147483648
    %v947 = vand.u32 %v946, 65535
    %v948 = vshra.s32 %v946, 16
    %v949 = vcvt.s32.f32 %v947
    %v950 = vcvt.s32.f32 %v948
    %951 = vmax.xlane.f32.xlu0 %v950
    %v952 = vpop.xlane.xlu0 %951
    %vm953 = vcmp.eq.f32.partialorder %v950, %v952
    %v954 = vsel %vm953, %v949, -inf
    %955 = vmax.xlane.f32.xlu0 %v954
    %v956 = vpop.xlane.xlu0 %955
    %v957 = vcvt.f32.s32 %v956
    %v958 = vcvt.f32.s32 %v952
    %v959 = vshll.u32 %v958, 16
    %v960 = vadd.s32 %v959, %v957
    %vm961 = vcmp.eq.s32.totalorder %v929, %v945
    %vm962 = vcmp.eq.s32.totalorder %v930, %v960
    %v963 = vsel %vm961, %v27, 2147483647
    %v964 = vsel %vm962, %v27, 2147483647
    %v965 = vsel %vm46, %v963, 2147483647
    %v966 = vand.u32 %v965, 65535
    %v967 = vshra.s32 %v965, 16
    %v968 = vcvt.s32.f32 %v966
    %v969 = vcvt.s32.f32 %v967
    %970 = vmin.xlane.f32.xlu0 %v969
    %v971 = vpop.xlane.xlu0 %970
    %vm972 = vcmp.eq.f32.partialorder %v969, %v971
    %v973 = vsel %vm972, %v968, inf
    %974 = vmin.xlane.f32.xlu0 %v973
    %v975 = vpop.xlane.xlu0 %974
    %v976 = vcvt.f32.s32 %v975
    %v977 = vcvt.f32.s32 %v971
    %v978 = vshll.u32 %v977, 16
    %v979 = vadd.s32 %v978, %v976
    %v980 = vsel %vm46, %v964, 2147483647
    %v981 = vand.u32 %v980, 65535
    %v982 = vshra.s32 %v980, 16
    %v983 = vcvt.s32.f32 %v981
    %v984 = vcvt.s32.f32 %v982
    %985 = vmin.xlane.f32.xlu0 %v984
    %v986 = vpop.xlane.xlu0 %985
    %vm987 = vcmp.eq.f32.partialorder %v984, %v986
    %v988 = vsel %vm987, %v983, inf
    %989 = vmin.xlane.f32.xlu0 %v988
    %v990 = vpop.xlane.xlu0 %989
    %v991 = vcvt.f32.s32 %v990
    %v992 = vcvt.f32.s32 %v986
    %v993 = vshll.u32 %v992, 16
    %v994 = vadd.s32 %v993, %v991
    %vm995 = vcmp.eq.s32.totalorder %v27, %v979
    %vm996 = vcmp.eq.s32.totalorder %v27, %v994
    %v997 = vsel %vm995, 2147483648, %v929
    %v998 = vsel %vm996, 2147483648, %v930
    %v999 = vsel %vm46, %v997, 2147483648
    %v1000 = vand.u32 %v999, 65535
    %v1001 = vshra.s32 %v999, 16
    %v1002 = vcvt.s32.f32 %v1000
    %v1003 = vcvt.s32.f32 %v1001
    %1004 = vmax.xlane.f32.xlu0 %v1003
    %v1005 = vpop.xlane.xlu0 %1004
    %vm1006 = vcmp.eq.f32.partialorder %v1003, %v1005
    %v1007 = vsel %vm1006, %v1002, -inf
    %1008 = vmax.xlane.f32.xlu0 %v1007
    %v1009 = vpop.xlane.xlu0 %1008
    %v1010 = vcvt.f32.s32 %v1009
    %v1011 = vcvt.f32.s32 %v1005
    %v1012 = vshll.u32 %v1011, 16
    %v1013 = vadd.s32 %v1012, %v1010
    %v1014 = vsel %vm46, %v998, 2147483648
    %v1015 = vand.u32 %v1014, 65535
    %v1016 = vshra.s32 %v1014, 16
    %v1017 = vcvt.s32.f32 %v1015
    %v1018 = vcvt.s32.f32 %v1016
    %1019 = vmax.xlane.f32.xlu0 %v1018
    %v1020 = vpop.xlane.xlu0 %1019
    %vm1021 = vcmp.eq.f32.partialorder %v1018, %v1020
    %v1022 = vsel %vm1021, %v1017, -inf
    %1023 = vmax.xlane.f32.xlu0 %v1022
    %v1024 = vpop.xlane.xlu0 %1023
    %v1025 = vcvt.f32.s32 %v1024
    %v1026 = vcvt.f32.s32 %v1020
    %v1027 = vshll.u32 %v1026, 16
    %v1028 = vadd.s32 %v1027, %v1025
    %vm1029 = vcmp.eq.s32.totalorder %v997, %v1013
    %vm1030 = vcmp.eq.s32.totalorder %v998, %v1028
    %v1031 = vsel %vm1029, %v27, 2147483647
    %v1032 = vsel %vm1030, %v27, 2147483647
    %v1033 = vsel %vm46, %v1031, 2147483647
    %v1034 = vand.u32 %v1033, 65535
    %v1035 = vshra.s32 %v1033, 16
    %v1036 = vcvt.s32.f32 %v1034
    %v1037 = vcvt.s32.f32 %v1035
    %1038 = vmin.xlane.f32.xlu0 %v1037
    %v1039 = vpop.xlane.xlu0 %1038
    %vm1040 = vcmp.eq.f32.partialorder %v1037, %v1039
    %v1041 = vsel %vm1040, %v1036, inf
    %1042 = vmin.xlane.f32.xlu0 %v1041
    %v1043 = vpop.xlane.xlu0 %1042
    %v1044 = vcvt.f32.s32 %v1043
    %v1045 = vcvt.f32.s32 %v1039
    %v1046 = vshll.u32 %v1045, 16
    %v1047 = vadd.s32 %v1046, %v1044
    %v1048 = vsel %vm46, %v1032, 2147483647
    %v1049 = vand.u32 %v1048, 65535
    %v1050 = vshra.s32 %v1048, 16
    %v1051 = vcvt.s32.f32 %v1049
    %v1052 = vcvt.s32.f32 %v1050
    %1053 = vmin.xlane.f32.xlu0 %v1052
    %v1054 = vpop.xlane.xlu0 %1053
    %vm1055 = vcmp.eq.f32.partialorder %v1052, %v1054
    %v1056 = vsel %vm1055, %v1051, inf
    %1057 = vmin.xlane.f32.xlu0 %v1056
    %v1058 = vpop.xlane.xlu0 %1057
    %v1059 = vcvt.f32.s32 %v1058
    %v1060 = vcvt.f32.s32 %v1054
    %v1061 = vshll.u32 %v1060, 16
    %v1062 = vadd.s32 %v1061, %v1059
    %vm1063 = vcmp.eq.s32.totalorder %v27, %v1047
    %vm1064 = vcmp.eq.s32.totalorder %v27, %v1062
    %v1065 = vsel %vm1063, 2147483648, %v997
    %v1066 = vsel %vm1064, 2147483648, %v998
    %v1067 = vsel %vm46, %v1065, 2147483648
    %v1068 = vand.u32 %v1067, 65535
    %v1069 = vshra.s32 %v1067, 16
    %v1070 = vcvt.s32.f32 %v1068
    %v1071 = vcvt.s32.f32 %v1069
    %1072 = vmax.xlane.f32.xlu0 %v1071
    %v1073 = vpop.xlane.xlu0 %1072
    %vm1074 = vcmp.eq.f32.partialorder %v1071, %v1073
    %v1075 = vsel %vm1074, %v1070, -inf
    %1076 = vmax.xlane.f32.xlu0 %v1075
    %v1077 = vpop.xlane.xlu0 %1076
    %v1078 = vcvt.f32.s32 %v1077
    %v1079 = vcvt.f32.s32 %v1073
    %v1080 = vshll.u32 %v1079, 16
    %v1081 = vadd.s32 %v1080, %v1078
    %v1082 = vsel %vm46, %v1066, 2147483648
    %v1083 = vand.u32 %v1082, 65535
    %v1084 = vshra.s32 %v1082, 16
    %v1085 = vcvt.s32.f32 %v1083
    %v1086 = vcvt.s32.f32 %v1084
    %1087 = vmax.xlane.f32.xlu0 %v1086
    %v1088 = vpop.xlane.xlu0 %1087
    %vm1089 = vcmp.eq.f32.partialorder %v1086, %v1088
    %v1090 = vsel %vm1089, %v1085, -inf
    %1091 = vmax.xlane.f32.xlu0 %v1090
    %v1092 = vpop.xlane.xlu0 %1091
    %v1093 = vcvt.f32.s32 %v1092
    %v1094 = vcvt.f32.s32 %v1088
    %v1095 = vshll.u32 %v1094, 16
    %v1096 = vadd.s32 %v1095, %v1093
    %vm1097 = vcmp.eq.s32.totalorder %v1065, %v1081
    %vm1098 = vcmp.eq.s32.totalorder %v1066, %v1096
    %v1099 = vsel %vm1097, %v27, 2147483647
    %v1100 = vsel %vm1098, %v27, 2147483647
    %v1101 = vsel %vm46, %v1099, 2147483647
    %v1102 = vand.u32 %v1101, 65535
    %v1103 = vshra.s32 %v1101, 16
    %v1104 = vcvt.s32.f32 %v1102
    %v1105 = vcvt.s32.f32 %v1103
    %1106 = vmin.xlane.f32.xlu0 %v1105
    %v1107 = vpop.xlane.xlu0 %1106
    %vm1108 = vcmp.eq.f32.partialorder %v1105, %v1107
    %v1109 = vsel %vm1108, %v1104, inf
    %1110 = vmin.xlane.f32.xlu0 %v1109
    %v1111 = vpop.xlane.xlu0 %1110
    %v1112 = vcvt.f32.s32 %v1111
    %v1113 = vcvt.f32.s32 %v1107
    %v1114 = vshll.u32 %v1113, 16
    %v1115 = vadd.s32 %v1114, %v1112
    %v1116 = vsel %vm46, %v1100, 2147483647
    %v1117 = vand.u32 %v1116, 65535
    %v1118 = vshra.s32 %v1116, 16
    %v1119 = vcvt.s32.f32 %v1117
    %v1120 = vcvt.s32.f32 %v1118
    %1121 = vmin.xlane.f32.xlu0 %v1120
    %v1122 = vpop.xlane.xlu0 %1121
    %vm1123 = vcmp.eq.f32.partialorder %v1120, %v1122
    %v1124 = vsel %vm1123, %v1119, inf
    %1125 = vmin.xlane.f32.xlu0 %v1124
    %v1126 = vpop.xlane.xlu0 %1125
    %v1127 = vcvt.f32.s32 %v1126
    %v1128 = vcvt.f32.s32 %v1122
    %v1129 = vshll.u32 %v1128, 16
    %v1130 = vadd.s32 %v1129, %v1127
    %vm1131 = vcmask 7168
    %v1132 = vsel %vm1131, %v61, %v129
    %v1133 = vsel %vm1131, %v76, %v144
    %vm1134 = vcmask 15360
    %v1135 = vsel %vm1134, %v1132, %v197
    %v1136 = vsel %vm1134, %v1133, %v212
    %vm1137 = vcmask 23552
    %v1138 = vsel %vm1137, %v1135, %v265
    %v1139 = vsel %vm1137, %v1136, %v280
    %vm1140 = vcmask 31744
    %v1141 = vsel %vm1140, %v1138, %v333
    %v1142 = vsel %vm1140, %v1139, %v348
    %vm1143 = vcmask 39936
    %v1144 = vsel %vm1143, %v1141, %v401
    %v1145 = vsel %vm1143, %v1142, %v416
    %vm1146 = vcmask 48128
    %v1147 = vsel %vm1146, %v1144, %v469
    %v1148 = vsel %vm1146, %v1145, %v484
    %vm1149 = vcmask 56320
    %v1150 = vsel %vm1149, %v1147, %v537
    %v1151 = vsel %vm1149, %v1148, %v552
    %vm1152 = vcmask 64512
    %v1153 = vsel %vm1152, %v1150, %v605
    %v1154 = vsel %vm1152, %v1151, %v620
    %vm1155 = vcmask 72704
    %v1156 = vsel %vm1155, %v1153, %v673
    %v1157 = vsel %vm1155, %v1154, %v688
    %vm1158 = vcmask 80896
    %v1159 = vsel %vm1158, %v1156, %v741
    %v1160 = vsel %vm1158, %v1157, %v756
    %vm1161 = vcmask 89088
    %v1162 = vsel %vm1161, %v1159, %v809
    %v1163 = vsel %vm1161, %v1160, %v824
    %vm1164 = vcmask 97280
    %v1165 = vsel %vm1164, %v1162, %v877
    %v1166 = vsel %vm1164, %v1163, %v892
    %vm1167 = vcmask 105472
    %v1168 = vsel %vm1167, %v1165, %v945
    %v1169 = vsel %vm1167, %v1166, %v960
    %vm1170 = vcmask 113664
    %v1171 = vsel %vm1170, %v1168, %v1013
    %v1172 = vsel %vm1170, %v1169, %v1028
    %vm1173 = vcmask 121856
    %v1174 = vsel %vm1173, %v1171, %v1081
    %v1175 = vsel %vm1173, %v1172, %v1096
    %vm1176 = vcmp.lt.s32.totalorder %v1174, 0
    %vm1177 = vcmp.lt.s32.totalorder %v1175, 0
    %v1178 = vxor.u32 %v1174, 2147483647
    %v1179 = vxor.u32 %v1175, 2147483647
    %v1180 = vsel %vm1176, %v1178, %v1174
    %v1181 = vsel %vm1177, %v1179, %v1175
    %v1184 = vsel %vm1131, %v95, %v163
    %v1185 = vsel %vm1131, %v110, %v178
    %v1186 = vsel %vm1134, %v1184, %v231
    %v1187 = vsel %vm1134, %v1185, %v246
    %v1188 = vsel %vm1137, %v1186, %v299
    %v1189 = vsel %vm1137, %v1187, %v314
    %v1190 = vsel %vm1140, %v1188, %v367
    %v1191 = vsel %vm1140, %v1189, %v382
    %v1192 = vsel %vm1143, %v1190, %v435
    %v1193 = vsel %vm1143, %v1191, %v450
    %v1194 = vsel %vm1146, %v1192, %v503
    %v1195 = vsel %vm1146, %v1193, %v518
    %v1196 = vsel %vm1149, %v1194, %v571
    %v1197 = vsel %vm1149, %v1195, %v586
    %v1198 = vsel %vm1152, %v1196, %v639
    %v1199 = vsel %vm1152, %v1197, %v654
    %v1200 = vsel %vm1155, %v1198, %v707
    %v1201 = vsel %vm1155, %v1199, %v722
    %v1202 = vsel %vm1158, %v1200, %v775
    %v1203 = vsel %vm1158, %v1201, %v790
    %v1204 = vsel %vm1161, %v1202, %v843
    %v1205 = vsel %vm1161, %v1203, %v858
    %v1206 = vsel %vm1164, %v1204, %v911
    %v1207 = vsel %vm1164, %v1205, %v926
    %v1208 = vsel %vm1167, %v1206, %v979
    %v1209 = vsel %vm1167, %v1207, %v994
    %v1210 = vsel %vm1170, %v1208, %v1047
    %v1211 = vsel %vm1170, %v1209, %v1062
    %v1212 = vsel %vm1173, %v1210, %v1115
    %v1213 = vsel %vm1173, %v1211, %v1130
    %vm1214 = vcmask 130048
    %v1215 = vsel %vm1214, %v1180, 0.0
    %v1216 = vsel %vm1214, %v1181, 0.0
    %v1217 = vsel %vm1214, %v1212, 0
    %v1218 = vsel %vm1214, %v1213, 0
    %1219 = vst [vmem:[#allocation5] sm:$0xff] %v1215
    %1220 = vst [vmem:[#allocation5 + $0x8] sm:$0xff] %v1216
    %1221 = vst [vmem:[#allocation6] sm:$0xff] %v1217
    %1222 = vst [vmem:[#allocation6 + $0x8] sm:$0xff] %v1218
    // Predicated region
    $region10: #{tpu_custom_call.1} parent=1 // pred_check
      _
    $region11: #{tpu_custom_call.1} parent=1 // pred_check_branch
      %1224 = sbr.rel (0) target = $region13
    $region12: #{tpu_custom_call.1} parent=1 // pred_region
      %s1226 = ssub.s32 256, 32
      %1227 = vsyncadd [#allocation4], %s1226
      %s1228 = sshll.u32 [#allocation5], 4
      %s1229 = int_to_ptr.vmem [resolvable:$true] %s1228
      %1234 = dma.vmem_to_hbm [thread:$0]  %s1229, 32, %s1, [#allocation4], 32, 32, 2
    $region13: #{tpu_custom_call.1} parent=1 // pred_fallthru
      _
    // Predicated region
    $region14: #{tpu_custom_call.1} parent=1 // pred_check
      _
    $region15: #{tpu_custom_call.1} parent=1 // pred_check_branch
      %1236 = sbr.rel (0) target = $region17
    $region16: #{tpu_custom_call.1} parent=1 // pred_region
      %s1238 = ssub.s32 256, 32
      %1239 = vsyncadd [#allocation7], %s1238
      %s1240 = sshll.u32 [#allocation6], 4
      %s1241 = int_to_ptr.vmem [resolvable:$true] %s1240
      %1246 = dma.vmem_to_hbm [thread:$0]  %s1241, 32, %s2, [#allocation7], 32, 32, 2
    $region17: #{tpu_custom_call.1} parent=1 // pred_fallthru
      _
    // Predicated region
    $region18: #{tpu_custom_call.1} parent=1 // pred_check
      _
    $region19: #{tpu_custom_call.1} parent=1 // pred_check_branch
      %1248 = sbr.rel (0) target = $region21
    $region20: #{tpu_custom_call.1} parent=1 // pred_region
      %1249 = dma.done [#allocation4], 256
    $region21: #{tpu_custom_call.1} parent=1 // pred_fallthru
      _
    // Predicated region
    $region22: #{tpu_custom_call.1} parent=1 // pred_check
      _
    $region23: #{tpu_custom_call.1} parent=1 // pred_check_branch
      %1251 = sbr.rel (0) target = $region25
    $region24: #{tpu_custom_call.1} parent=1 // pred_region
      %1252 = dma.done [#allocation7], 256
    $region25: #{tpu_custom_call.1} parent=1 // pred_fallthru
      _
    %1253 = vsyncpa [#allocation3], 1
    %1254 = vsyncpa [#allocation4], 1
    %1255 = vsyncpa [#allocation7], 1

</llo_original>
